<compile_context>
chip_gen: v7x
topology: tpu7x:2x2x1
jax: 0.10.0
libtpu: 0.0.40
codegen_flags: <defaults>
</compile_context>

<pallas_src>
import functools

import jax
import jax.numpy as jnp
from jax.experimental import pallas as pl
from jax.experimental.pallas import tpu as pltpu

# True layer dims of the PyTorch AutoEncoder (8 Linear layers).
TRUE_DIMS = [28 * 28, 128, 64, 12, 3, 12, 64, 128, 28 * 28]
# Lane-dense padded dims: every intermediate feature dim padded to 128 so activations
# are full-lane vregs. Padded weight columns/rows and biases are zero => identical math.
PAD_DIMS = [28 * 28, 128, 128, 128, 128, 128, 128, 128, 28 * 28]
N_LAYERS = len(TRUE_DIMS) - 1
# Activation after each Linear (matches the nn.Sequential exactly).
ACTS = ("relu", "relu", "relu", None, "relu", "relu", "relu", "tanh")


def _round_up(x, m):
    return (x + m - 1) // m * m


def _autoencoder_kernel(x_ref, *rest):
    """rest = (w1, b1, ..., w8, b8, out_ref). All 8 Linears + activations fused."""
    out_ref = rest[-1]
    params = rest[:-1]

    h = x_ref[...]  # bf16 (tile_b, 784)
    for layer in range(N_LAYERS):
        w = params[2 * layer][...]        # bf16 (in_pad, out_pad)
        b = params[2 * layer + 1][...]    # f32  (1, out_pad)
        # bf16 matmul on the MXU with f32 accumulation; bias + activation in f32,
        # then downcast so the live activation stays bf16 between layers.
        z = jnp.dot(h, w, preferred_element_type=jnp.float32) + b
        act = ACTS[layer]
        if act == "relu":
            z = jnp.maximum(z, 0.0)
        elif act == "tanh":
            z = jnp.tanh(z)
        h = z.astype(jnp.bfloat16)
    out_ref[...] = h


@functools.partial(jax.jit, static_argnames=("tile_b",))
def _autoencoder_pallas(x, params, tile_b):
    B, D = x.shape  # B is a multiple of tile_b here (wrapper pads); x is bf16.

    # Tile over batch only; each weight/bias block is the full (padded) array and its
    # index_map is constant, so it stays resident in VMEM across the whole grid.
    in_specs = [pl.BlockSpec((tile_b, D), lambda i: (i, 0))]
    for layer in range(N_LAYERS):
        d_in, d_out = PAD_DIMS[layer], PAD_DIMS[layer + 1]
        in_specs.append(pl.BlockSpec((d_in, d_out), lambda i: (0, 0)))  # weight
        in_specs.append(pl.BlockSpec((1, d_out), lambda i: (0, 0)))     # bias

    out_spec = pl.BlockSpec((tile_b, D), lambda i: (i, 0))

    pad_macs = sum(PAD_DIMS[l] * PAD_DIMS[l + 1] for l in range(N_LAYERS))
    weight_bytes = sum(PAD_DIMS[l] * PAD_DIMS[l + 1] * 2 + PAD_DIMS[l + 1] * 4
                       for l in range(N_LAYERS))
    cost = pl.CostEstimate(
        flops=2 * B * pad_macs,
        transcendentals=B * D,                       # final tanh
        bytes_accessed=B * D * 2 * 2 + weight_bytes,  # bf16 in + bf16 out + params
    )

    return pl.pallas_call(
        _autoencoder_kernel,
        out_shape=jax.ShapeDtypeStruct((B, D), jnp.bfloat16),
        grid_spec=pltpu.PrefetchScalarGridSpec(
            num_scalar_prefetch=0,
            grid=(B // tile_b,),
            in_specs=in_specs,
            out_specs=out_spec,
        ),
        compiler_params=pltpu.CompilerParams(
            dimension_semantics=("parallel",),
            # Big batch tiles need more than v5e's 16 MiB scoped default; 32 MiB is
            # within physical VMEM on v5e/v6e (128 MiB) and v7x (64 MiB per TC).
            vmem_limit_bytes=32 * 1024 * 1024,
        ),
        cost_estimate=cost,
    )(x, *params)


def autoencoder_forward(x, params, tile_b=1024):
    """x: (B, 784) f32 or bf16.  params: flat [w1,b1,...,w8,b8] (padded dims, bf16 weights).

    tile_b=1024: with bf16 I/O the double-buffered in/out tiles are ~6 MiB plus ~1.2 MiB
    of resident bf16 weights and a few MiB of f32 temporaries -- comfortably inside the
    explicit 32 MiB VMEM limit on every generation, while cutting serial grid steps 4x
    vs tile_b=256.
    """
    B, D = x.shape
    assert D == 28 * 28
    x = x.astype(jnp.bfloat16)  # halve HBM traffic; bf16 is the kernel's I/O dtype.
    # Effective batch tile: bf16-sublane aligned (multiple of 16), no larger than the
    # (padded) batch, and kept to >= 2 grid steps when the batch allows so v7x's two
    # TensorCores both get work via the "parallel" batch axis.
    tb = min(tile_b, _round_up(B, 16))
    if B > 16 and pl.cdiv(B, tb) < 2:
        tb = _round_up(pl.cdiv(B, 2), 16)
    Bp = _round_up(B, tb)
    if Bp != B:
        x = jnp.pad(x, ((0, Bp - B), (0, 0)))
    out = _autoencoder_pallas(x, params, tb)
    return out[:B]


def init_params(key):
    """nn.Linear-style U(-1/sqrt(fan_in), 1/sqrt(fan_in)) init on the TRUE dims, then
    zero-padded to the lane-dense PAD dims (identical math); weights stored in bf16,
    biases in f32."""
    params = []
    for layer in range(N_LAYERS):
        d_in, d_out = TRUE_DIMS[layer], TRUE_DIMS[layer + 1]
        p_in, p_out = PAD_DIMS[layer], PAD_DIMS[layer + 1]
        key, kw, kb = jax.random.split(key, 3)
        bound = 1.0 / (d_in ** 0.5)
        w = jax.random.uniform(kw, (d_in, d_out), jnp.float32, -bound, bound)
        b = jax.random.uniform(kb, (1, d_out), jnp.float32, -bound, bound)
        w = jnp.pad(w, ((0, p_in - d_in), (0, p_out - d_out))).astype(jnp.bfloat16)
        b = jnp.pad(b, ((0, 0), (0, p_out - d_out)))
        params += [w, b]
    return params


def reference_forward(x, params):
    """Pure-JAX reference with the same mixed precision as the kernel
    (bf16 matmul inputs, f32 accumulate + bias + activation, bf16 carry)."""
    h = x.astype(jnp.bfloat16)
    for layer in range(N_LAYERS):
        w, b = params[2 * layer], params[2 * layer + 1]
        z = jnp.dot(h, w, preferred_element_type=jnp.float32) + b
        act = ACTS[layer]
        if act == "relu":
            z = jnp.maximum(z, 0.0)
        elif act == "tanh":
            z = jnp.tanh(z)
        h = z.astype(jnp.bfloat16)
    return h


if __name__ == "__main__":
    key = jax.random.PRNGKey(0)
    key, kx = jax.random.split(key)

    # Small test batch, deliberately NOT a multiple of 16/tile to exercise the
    # cdiv + pad-and-slice path; the wrapper picks a 2-step grid (tile_b=16).
    B = 20
    x = jax.random.normal(kx, (B, 28 * 28), jnp.float32)
    params = init_params(key)

    out = autoencoder_forward(x, params)
    out = jax.block_until_ready(out)

    ref = reference_forward(x, params)
    assert out.shape == (B, 28 * 28)
    assert out.dtype == jnp.bfloat16
    assert jnp.allclose(out.astype(jnp.float32), ref.astype(jnp.float32),
                        atol=2e-2, rtol=2e-2), "mismatch vs reference"

    print("KERNEL_OK")
</pallas_src>

<mosaic_0001>
module attributes {stable_mosaic.version = 11 : i64} {
  func.func @_autoencoder_kernel(%arg0: i32, %arg1: memref<16x784xbf16, #tpu.memory_space<vmem>>, %arg2: memref<784x128xbf16, #tpu.memory_space<vmem>>, %arg3: memref<1x128xf32, #tpu.memory_space<vmem>>, %arg4: memref<128x128xbf16, #tpu.memory_space<vmem>>, %arg5: memref<1x128xf32, #tpu.memory_space<vmem>>, %arg6: memref<128x128xbf16, #tpu.memory_space<vmem>>, %arg7: memref<1x128xf32, #tpu.memory_space<vmem>>, %arg8: memref<128x128xbf16, #tpu.memory_space<vmem>>, %arg9: memref<1x128xf32, #tpu.memory_space<vmem>>, %arg10: memref<128x128xbf16, #tpu.memory_space<vmem>>, %arg11: memref<1x128xf32, #tpu.memory_space<vmem>>, %arg12: memref<128x128xbf16, #tpu.memory_space<vmem>>, %arg13: memref<1x128xf32, #tpu.memory_space<vmem>>, %arg14: memref<128x128xbf16, #tpu.memory_space<vmem>>, %arg15: memref<1x128xf32, #tpu.memory_space<vmem>>, %arg16: memref<128x784xbf16, #tpu.memory_space<vmem>>, %arg17: memref<1x784xf32, #tpu.memory_space<vmem>>, %arg18: memref<16x784xbf16, #tpu.memory_space<vmem>>) attributes {dimension_semantics = [#tpu.dimension_semantics<parallel>], iteration_bounds = array<i64: 2>, scalar_prefetch = 0 : i64, scratch_operands = 0 : i64, tpu.core_type = #tpu.core_type<tc>, window_params = [{transform_indices = @transform_0, window_bounds = array<i64: 16, 784>}, {pipeline_mode = #tpu.pipeline_mode<synchronous>, transform_indices = @transform_1, window_bounds = array<i64: 784, 128>}, {pipeline_mode = #tpu.pipeline_mode<synchronous>, transform_indices = @transform_2, window_bounds = array<i64: 1, 128>}, {pipeline_mode = #tpu.pipeline_mode<synchronous>, transform_indices = @transform_3, window_bounds = array<i64: 128, 128>}, {pipeline_mode = #tpu.pipeline_mode<synchronous>, transform_indices = @transform_4, window_bounds = array<i64: 1, 128>}, {pipeline_mode = #tpu.pipeline_mode<synchronous>, transform_indices = @transform_5, window_bounds = array<i64: 128, 128>}, {pipeline_mode = #tpu.pipeline_mode<synchronous>, transform_indices = @transform_6, window_bounds = array<i64: 1, 128>}, {pipeline_mode = #tpu.pipeline_mode<synchronous>, transform_indices = @transform_7, window_bounds = array<i64: 128, 128>}, {pipeline_mode = #tpu.pipeline_mode<synchronous>, transform_indices = @transform_8, window_bounds = array<i64: 1, 128>}, {pipeline_mode = #tpu.pipeline_mode<synchronous>, transform_indices = @transform_9, window_bounds = array<i64: 128, 128>}, {pipeline_mode = #tpu.pipeline_mode<synchronous>, transform_indices = @transform_10, window_bounds = array<i64: 1, 128>}, {pipeline_mode = #tpu.pipeline_mode<synchronous>, transform_indices = @transform_11, window_bounds = array<i64: 128, 128>}, {pipeline_mode = #tpu.pipeline_mode<synchronous>, transform_indices = @transform_12, window_bounds = array<i64: 1, 128>}, {pipeline_mode = #tpu.pipeline_mode<synchronous>, transform_indices = @transform_13, window_bounds = array<i64: 128, 128>}, {pipeline_mode = #tpu.pipeline_mode<synchronous>, transform_indices = @transform_14, window_bounds = array<i64: 1, 128>}, {pipeline_mode = #tpu.pipeline_mode<synchronous>, transform_indices = @transform_15, window_bounds = array<i64: 128, 784>}, {pipeline_mode = #tpu.pipeline_mode<synchronous>, transform_indices = @transform_16, window_bounds = array<i64: 1, 784>}, {transform_indices = @transform_17, window_bounds = array<i64: 16, 784>}]} {
    %c0 = arith.constant 0 : index
    %c0_0 = arith.constant 0 : index
    %0 = vector.load %arg1[%c0, %c0_0] : memref<16x784xbf16, #tpu.memory_space<vmem>>, vector<16x784xbf16>
    %c0_1 = arith.constant 0 : index
    %c0_2 = arith.constant 0 : index
    %1 = vector.load %arg2[%c0_1, %c0_2] : memref<784x128xbf16, #tpu.memory_space<vmem>>, vector<784x128xbf16>
    %c0_3 = arith.constant 0 : index
    %c0_4 = arith.constant 0 : index
    %2 = vector.load %arg3[%c0_3, %c0_4] : memref<1x128xf32, #tpu.memory_space<vmem>>, vector<1x128xf32>
    %cst = arith.constant dense<0.000000e+00> : vector<16x128xf32>
    %3 = tpu.matmul %0, %1, %cst {dimension_numbers = #tpu.dot_dimension_numbers<[1], [0], [0], [1], [0, 0, 1, 1], [], []>} : vector<16x784xbf16>, vector<784x128xbf16>, vector<16x128xf32> -> vector<16x128xf32>
    %4 = vector.broadcast %2 : vector<1x128xf32> to vector<16x128xf32>
    %5 = arith.addf %3, %4 : vector<16x128xf32>
    %cst_5 = arith.constant 0.000000e+00 : f32
    %6 = vector.broadcast %cst_5 : f32 to vector<16x128xf32>
    %7 = arith.maximumf %5, %6 : vector<16x128xf32>
    %8 = arith.truncf %7 : vector<16x128xf32> to vector<16x128xbf16>
    %c0_6 = arith.constant 0 : index
    %c0_7 = arith.constant 0 : index
    %9 = vector.load %arg4[%c0_6, %c0_7] : memref<128x128xbf16, #tpu.memory_space<vmem>>, vector<128x128xbf16>
    %c0_8 = arith.constant 0 : index
    %c0_9 = arith.constant 0 : index
    %10 = vector.load %arg5[%c0_8, %c0_9] : memref<1x128xf32, #tpu.memory_space<vmem>>, vector<1x128xf32>
    %cst_10 = arith.constant dense<0.000000e+00> : vector<16x128xf32>
    %11 = tpu.matmul %8, %9, %cst_10 {dimension_numbers = #tpu.dot_dimension_numbers<[1], [0], [0], [1], [0, 0, 1, 1], [], []>} : vector<16x128xbf16>, vector<128x128xbf16>, vector<16x128xf32> -> vector<16x128xf32>
    %12 = vector.broadcast %10 : vector<1x128xf32> to vector<16x128xf32>
    %13 = arith.addf %11, %12 : vector<16x128xf32>
    %cst_11 = arith.constant 0.000000e+00 : f32
    %14 = vector.broadcast %cst_11 : f32 to vector<16x128xf32>
    %15 = arith.maximumf %13, %14 : vector<16x128xf32>
    %16 = arith.truncf %15 : vector<16x128xf32> to vector<16x128xbf16>
    %c0_12 = arith.constant 0 : index
    %c0_13 = arith.constant 0 : index
    %17 = vector.load %arg6[%c0_12, %c0_13] : memref<128x128xbf16, #tpu.memory_space<vmem>>, vector<128x128xbf16>
    %c0_14 = arith.constant 0 : index
    %c0_15 = arith.constant 0 : index
    %18 = vector.load %arg7[%c0_14, %c0_15] : memref<1x128xf32, #tpu.memory_space<vmem>>, vector<1x128xf32>
    %cst_16 = arith.constant dense<0.000000e+00> : vector<16x128xf32>
    %19 = tpu.matmul %16, %17, %cst_16 {dimension_numbers = #tpu.dot_dimension_numbers<[1], [0], [0], [1], [0, 0, 1, 1], [], []>} : vector<16x128xbf16>, vector<128x128xbf16>, vector<16x128xf32> -> vector<16x128xf32>
    %20 = vector.broadcast %18 : vector<1x128xf32> to vector<16x128xf32>
    %21 = arith.addf %19, %20 : vector<16x128xf32>
    %cst_17 = arith.constant 0.000000e+00 : f32
    %22 = vector.broadcast %cst_17 : f32 to vector<16x128xf32>
    %23 = arith.maximumf %21, %22 : vector<16x128xf32>
    %24 = arith.truncf %23 : vector<16x128xf32> to vector<16x128xbf16>
    %c0_18 = arith.constant 0 : index
    %c0_19 = arith.constant 0 : index
    %25 = vector.load %arg8[%c0_18, %c0_19] : memref<128x128xbf16, #tpu.memory_space<vmem>>, vector<128x128xbf16>
    %c0_20 = arith.constant 0 : index
    %c0_21 = arith.constant 0 : index
    %26 = vector.load %arg9[%c0_20, %c0_21] : memref<1x128xf32, #tpu.memory_space<vmem>>, vector<1x128xf32>
    %cst_22 = arith.constant dense<0.000000e+00> : vector<16x128xf32>
    %27 = tpu.matmul %24, %25, %cst_22 {dimension_numbers = #tpu.dot_dimension_numbers<[1], [0], [0], [1], [0, 0, 1, 1], [], []>} : vector<16x128xbf16>, vector<128x128xbf16>, vector<16x128xf32> -> vector<16x128xf32>
    %28 = vector.broadcast %26 : vector<1x128xf32> to vector<16x128xf32>
    %29 = arith.addf %27, %28 : vector<16x128xf32>
    %30 = arith.truncf %29 : vector<16x128xf32> to vector<16x128xbf16>
    %c0_23 = arith.constant 0 : index
    %c0_24 = arith.constant 0 : index
    %31 = vector.load %arg10[%c0_23, %c0_24] : memref<128x128xbf16, #tpu.memory_space<vmem>>, vector<128x128xbf16>
    %c0_25 = arith.constant 0 : index
    %c0_26 = arith.constant 0 : index
    %32 = vector.load %arg11[%c0_25, %c0_26] : memref<1x128xf32, #tpu.memory_space<vmem>>, vector<1x128xf32>
    %cst_27 = arith.constant dense<0.000000e+00> : vector<16x128xf32>
    %33 = tpu.matmul %30, %31, %cst_27 {dimension_numbers = #tpu.dot_dimension_numbers<[1], [0], [0], [1], [0, 0, 1, 1], [], []>} : vector<16x128xbf16>, vector<128x128xbf16>, vector<16x128xf32> -> vector<16x128xf32>
    %34 = vector.broadcast %32 : vector<1x128xf32> to vector<16x128xf32>
    %35 = arith.addf %33, %34 : vector<16x128xf32>
    %cst_28 = arith.constant 0.000000e+00 : f32
    %36 = vector.broadcast %cst_28 : f32 to vector<16x128xf32>
    %37 = arith.maximumf %35, %36 : vector<16x128xf32>
    %38 = arith.truncf %37 : vector<16x128xf32> to vector<16x128xbf16>
    %c0_29 = arith.constant 0 : index
    %c0_30 = arith.constant 0 : index
    %39 = vector.load %arg12[%c0_29, %c0_30] : memref<128x128xbf16, #tpu.memory_space<vmem>>, vector<128x128xbf16>
    %c0_31 = arith.constant 0 : index
    %c0_32 = arith.constant 0 : index
    %40 = vector.load %arg13[%c0_31, %c0_32] : memref<1x128xf32, #tpu.memory_space<vmem>>, vector<1x128xf32>
    %cst_33 = arith.constant dense<0.000000e+00> : vector<16x128xf32>
    %41 = tpu.matmul %38, %39, %cst_33 {dimension_numbers = #tpu.dot_dimension_numbers<[1], [0], [0], [1], [0, 0, 1, 1], [], []>} : vector<16x128xbf16>, vector<128x128xbf16>, vector<16x128xf32> -> vector<16x128xf32>
    %42 = vector.broadcast %40 : vector<1x128xf32> to vector<16x128xf32>
    %43 = arith.addf %41, %42 : vector<16x128xf32>
    %cst_34 = arith.constant 0.000000e+00 : f32
    %44 = vector.broadcast %cst_34 : f32 to vector<16x128xf32>
    %45 = arith.maximumf %43, %44 : vector<16x128xf32>
    %46 = arith.truncf %45 : vector<16x128xf32> to vector<16x128xbf16>
    %c0_35 = arith.constant 0 : index
    %c0_36 = arith.constant 0 : index
    %47 = vector.load %arg14[%c0_35, %c0_36] : memref<128x128xbf16, #tpu.memory_space<vmem>>, vector<128x128xbf16>
    %c0_37 = arith.constant 0 : index
    %c0_38 = arith.constant 0 : index
    %48 = vector.load %arg15[%c0_37, %c0_38] : memref<1x128xf32, #tpu.memory_space<vmem>>, vector<1x128xf32>
    %cst_39 = arith.constant dense<0.000000e+00> : vector<16x128xf32>
    %49 = tpu.matmul %46, %47, %cst_39 {dimension_numbers = #tpu.dot_dimension_numbers<[1], [0], [0], [1], [0, 0, 1, 1], [], []>} : vector<16x128xbf16>, vector<128x128xbf16>, vector<16x128xf32> -> vector<16x128xf32>
    %50 = vector.broadcast %48 : vector<1x128xf32> to vector<16x128xf32>
    %51 = arith.addf %49, %50 : vector<16x128xf32>
    %cst_40 = arith.constant 0.000000e+00 : f32
    %52 = vector.broadcast %cst_40 : f32 to vector<16x128xf32>
    %53 = arith.maximumf %51, %52 : vector<16x128xf32>
    %54 = arith.truncf %53 : vector<16x128xf32> to vector<16x128xbf16>
    %c0_41 = arith.constant 0 : index
    %c0_42 = arith.constant 0 : index
    %55 = vector.load %arg16[%c0_41, %c0_42] : memref<128x784xbf16, #tpu.memory_space<vmem>>, vector<128x784xbf16>
    %c0_43 = arith.constant 0 : index
    %c0_44 = arith.constant 0 : index
    %56 = vector.load %arg17[%c0_43, %c0_44] : memref<1x784xf32, #tpu.memory_space<vmem>>, vector<1x784xf32>
    %cst_45 = arith.constant dense<0.000000e+00> : vector<16x784xf32>
    %57 = tpu.matmul %54, %55, %cst_45 {dimension_numbers = #tpu.dot_dimension_numbers<[1], [0], [0], [1], [0, 0, 1, 1], [], []>} : vector<16x128xbf16>, vector<128x784xbf16>, vector<16x784xf32> -> vector<16x784xf32>
    %58 = vector.broadcast %56 : vector<1x784xf32> to vector<16x784xf32>
    %59 = arith.addf %57, %58 : vector<16x784xf32>
    %60 = math.tanh %59 : vector<16x784xf32>
    %61 = arith.truncf %60 : vector<16x784xf32> to vector<16x784xbf16>
    %c0_46 = arith.constant 0 : index
    %c0_47 = arith.constant 0 : index
    %62 = vector.load %arg18[%c0_46, %c0_47] : memref<16x784xbf16, #tpu.memory_space<vmem>>, vector<16x784xbf16>
    tpu.vector_store %arg18[%c0_46, %c0_47], %61 {strides = array<i32>} : memref<16x784xbf16, #tpu.memory_space<vmem>>, vector<16x784xbf16>,
    return
  }
  func.func @transform_0(%arg0: i32) -> (i32, i32) {
    %c0_i32 = arith.constant 0 : i32
    %c0_i32_0 = arith.constant 0 : i32
    return %arg0, %c0_i32 : i32, i32
  }
  func.func @transform_1(%arg0: i32) -> (i32, i32) {
    %c0_i32 = arith.constant 0 : i32
    %c0_i32_0 = arith.constant 0 : i32
    %c0_i32_1 = arith.constant 0 : i32
    return %c0_i32, %c0_i32_0 : i32, i32
  }
  func.func @transform_2(%arg0: i32) -> (i32, i32) {
    %c0_i32 = arith.constant 0 : i32
    %c0_i32_0 = arith.constant 0 : i32
    %c0_i32_1 = arith.constant 0 : i32
    return %c0_i32, %c0_i32_0 : i32, i32
  }
  func.func @transform_3(%arg0: i32) -> (i32, i32) {
    %c0_i32 = arith.constant 0 : i32
    %c0_i32_0 = arith.constant 0 : i32
    %c0_i32_1 = arith.constant 0 : i32
    return %c0_i32, %c0_i32_0 : i32, i32
  }
  func.func @transform_4(%arg0: i32) -> (i32, i32) {
    %c0_i32 = arith.constant 0 : i32
    %c0_i32_0 = arith.constant 0 : i32
    %c0_i32_1 = arith.constant 0 : i32
    return %c0_i32, %c0_i32_0 : i32, i32
  }
  func.func @transform_5(%arg0: i32) -> (i32, i32) {
    %c0_i32 = arith.constant 0 : i32
    %c0_i32_0 = arith.constant 0 : i32
    %c0_i32_1 = arith.constant 0 : i32
    return %c0_i32, %c0_i32_0 : i32, i32
  }
  func.func @transform_6(%arg0: i32) -> (i32, i32) {
    %c0_i32 = arith.constant 0 : i32
    %c0_i32_0 = arith.constant 0 : i32
    %c0_i32_1 = arith.constant 0 : i32
    return %c0_i32, %c0_i32_0 : i32, i32
  }
  func.func @transform_7(%arg0: i32) -> (i32, i32) {
    %c0_i32 = arith.constant 0 : i32
    %c0_i32_0 = arith.constant 0 : i32
    %c0_i32_1 = arith.constant 0 : i32
    return %c0_i32, %c0_i32_0 : i32, i32
  }
  func.func @transform_8(%arg0: i32) -> (i32, i32) {
    %c0_i32 = arith.constant 0 : i32
    %c0_i32_0 = arith.constant 0 : i32
    %c0_i32_1 = arith.constant 0 : i32
    return %c0_i32, %c0_i32_0 : i32, i32
  }
  func.func @transform_9(%arg0: i32) -> (i32, i32) {
    %c0_i32 = arith.constant 0 : i32
    %c0_i32_0 = arith.constant 0 : i32
    %c0_i32_1 = arith.constant 0 : i32
    return %c0_i32, %c0_i32_0 : i32, i32
  }
  func.func @transform_10(%arg0: i32) -> (i32, i32) {
    %c0_i32 = arith.constant 0 : i32
    %c0_i32_0 = arith.constant 0 : i32
    %c0_i32_1 = arith.constant 0 : i32
    return %c0_i32, %c0_i32_0 : i32, i32
  }
  func.func @transform_11(%arg0: i32) -> (i32, i32) {
    %c0_i32 = arith.constant 0 : i32
    %c0_i32_0 = arith.constant 0 : i32
    %c0_i32_1 = arith.constant 0 : i32
    return %c0_i32, %c0_i32_0 : i32, i32
  }
  func.func @transform_12(%arg0: i32) -> (i32, i32) {
    %c0_i32 = arith.constant 0 : i32
    %c0_i32_0 = arith.constant 0 : i32
    %c0_i32_1 = arith.constant 0 : i32
    return %c0_i32, %c0_i32_0 : i32, i32
  }
  func.func @transform_13(%arg0: i32) -> (i32, i32) {
    %c0_i32 = arith.constant 0 : i32
    %c0_i32_0 = arith.constant 0 : i32
    %c0_i32_1 = arith.constant 0 : i32
    return %c0_i32, %c0_i32_0 : i32, i32
  }
  func.func @transform_14(%arg0: i32) -> (i32, i32) {
    %c0_i32 = arith.constant 0 : i32
    %c0_i32_0 = arith.constant 0 : i32
    %c0_i32_1 = arith.constant 0 : i32
    return %c0_i32, %c0_i32_0 : i32, i32
  }
  func.func @transform_15(%arg0: i32) -> (i32, i32) {
    %c0_i32 = arith.constant 0 : i32
    %c0_i32_0 = arith.constant 0 : i32
    %c0_i32_1 = arith.constant 0 : i32
    return %c0_i32, %c0_i32_0 : i32, i32
  }
  func.func @transform_16(%arg0: i32) -> (i32, i32) {
    %c0_i32 = arith.constant 0 : i32
    %c0_i32_0 = arith.constant 0 : i32
    %c0_i32_1 = arith.constant 0 : i32
    return %c0_i32, %c0_i32_0 : i32, i32
  }
  func.func @transform_17(%arg0: i32) -> (i32, i32) {
    %c0_i32 = arith.constant 0 : i32
    %c0_i32_0 = arith.constant 0 : i32
    return %arg0, %c0_i32 : i32, i32
  }
}

</mosaic_0001>

<llo_original>
// kernel: _autoencoder_pallas.1
$region0: #{_autoencoder_pallas.1}
  #allocation0 [shape = 'u32[]', space=smem, size = 0x4, offset = 0x4, fixed_abs, tag = 'smem constant byte address 0x4 - core index']
  #allocation1 [shape = 'u32[144,128]{1,0:T(1,128)}', space=vmem, size = 0x12000, scoped, tag = 'internal scratch']
  %s0 = inlined_call_operand.vmem [shape: bf16[32,784], index: 0, kind: input, shape index: {}]
  %s1 = inlined_call_operand.vmem [shape: bf16[784,128], index: 1, kind: input, shape index: {}]
  %s2 = inlined_call_operand.vmem [shape: f32[1,128], index: 2, kind: input, shape index: {}]
  %s3 = inlined_call_operand.vmem [shape: bf16[128,128], index: 3, kind: input, shape index: {}]
  %s4 = inlined_call_operand.vmem [shape: f32[1,128], index: 4, kind: input, shape index: {}]
  %s5 = inlined_call_operand.vmem [shape: bf16[128,128], index: 5, kind: input, shape index: {}]
  %s6 = inlined_call_operand.vmem [shape: f32[1,128], index: 6, kind: input, shape index: {}]
  %s7 = inlined_call_operand.vmem [shape: bf16[128,128], index: 7, kind: input, shape index: {}]
  %s8 = inlined_call_operand.vmem [shape: f32[1,128], index: 8, kind: input, shape index: {}]
  %s9 = inlined_call_operand.vmem [shape: bf16[128,128], index: 9, kind: input, shape index: {}]
  %s10 = inlined_call_operand.vmem [shape: f32[1,128], index: 10, kind: input, shape index: {}]
  %s11 = inlined_call_operand.vmem [shape: bf16[128,128], index: 11, kind: input, shape index: {}]
  %s12 = inlined_call_operand.vmem [shape: f32[1,128], index: 12, kind: input, shape index: {}]
  %s13 = inlined_call_operand.hbm [shape: bf16[128,128], index: 13, kind: input, shape index: {}]
  %s14 = inlined_call_operand.vmem [shape: f32[1,128], index: 14, kind: input, shape index: {}]
  %s15 = inlined_call_operand.vmem [shape: bf16[128,784], index: 15, kind: input, shape index: {}]
  %s16 = inlined_call_operand.vmem [shape: f32[1,784], index: 16, kind: input, shape index: {}]
  %s17 = inlined_call_operand.hbm [shape: bf16[32,784], index: 17, kind: output, shape index: {}]
  %s18 = sld [smem:[#allocation0]]
  $region105: #{_autoencoder_pallas.1} parent=0
    _
  %s20 = ssub.s32 1, %s18
  %s21 = scalar_select 0, %s20, %s18
  $region1: #{_autoencoder_pallas.1} parent=0
    #allocation2 [shape = 'u8[32768]{0}', space=vmem, size = 0x8000, scoped, tag = 'input window, operand 13, single buffered']
    #allocation3 [shape = 's32[2]{0}', space=sflag, size = 0x8, scoped, tag = 'scoped memory for _autoencoder_pallas.1']
    #allocation4 [shape = 's32[2]{0}', space=sflag, size = 0x8, scoped, tag = 'scoped memory for _autoencoder_pallas.1']
    #allocation5 [shape = 'u8[57344]{0}', space=vmem, size = 0xe000, scoped, tag = 'output window, operand 0']
    %22 = vsyncpa [#allocation3], 0
    %23 = vsyncpa [#allocation4], 0
    %s24 = scalar_lea.sflag [#allocation4], 1
    %25 = vsyncpa %s24, 0
    loop: start=0, step=1, limit=4
    $region2: #{_autoencoder_pallas.1} parent=1 // loop_pre_header
      _
    $region3: #{_autoencoder_pallas.1} parent=1 // loop_header
      %s27 = sphi 0, %s31
      %p28 = scmp.ge.s32.totalorder %s27, 4
      %s37 = sphi 0, %s39
      %s40 = sphi 0, %s37
      %s41 = sphi 0, %s40
      %s57 = sphi 0, %s41
      %s61 = sphi 0, %s61
      %s63 = sphi 0, %s61
      %s64 = sphi 0, %s63
      %s78 = sphi 0, %s64
      %s82 = sphi 0, %s82
      %s84 = sphi 0, %s82
      %s85 = sphi 0, %s84
      %s99 = sphi 0, %s85
      %s103 = sphi 0, %s103
      %s105 = sphi 0, %s103
      %s106 = sphi 0, %s105
      %s120 = sphi 0, %s106
      %s124 = sphi 0, %s124
      %s126 = sphi 0, %s124
      %s127 = sphi 0, %s126
      %s141 = sphi 0, %s127
      %s145 = sphi 0, %s145
      %s147 = sphi 0, %s145
      %s148 = sphi 0, %s147
      %s162 = sphi 0, %s148
      %s166 = sphi 0, %s166
      %s168 = sphi 0, %s166
      %s169 = sphi 0, %s168
      %s183 = sphi 0, %s169
      %s187 = sphi 0, %s187
      %s189 = sphi 0, %s187
      %s190 = sphi 0, %s189
      %s204 = sphi 0, %s190
      %s208 = sphi 0, %s208
      %s210 = sphi 0, %s208
      %s211 = sphi 0, %s210
      %s225 = sphi 0, %s211
      %s229 = sphi 0, %s229
      %s231 = sphi 0, %s229
      %s232 = sphi 0, %s231
      %s246 = sphi 0, %s232
      %s250 = sphi 0, %s250
      %s252 = sphi 0, %s250
      %s253 = sphi 0, %s252
      %s267 = sphi 0, %s253
      %s271 = sphi 0, %s271
      %s273 = sphi 0, %s271
      %s274 = sphi 0, %s273
      %s288 = sphi 0, %s274
      %s292 = sphi 0, %s292
      %s294 = sphi 0, %s292
      %s295 = sphi 0, %s294
      %s309 = sphi 0, %s295
      %s313 = sphi 0, %s313
      %s315 = sphi 0, %s313
      %s316 = sphi 0, %s315
      %s330 = sphi 0, %s316
      %s334 = sphi 0, %s334
      %s336 = sphi 0, %s334
      %s337 = sphi 0, %s336
      %s351 = sphi 0, %s337
      %s355 = sphi 0, %s355
      %s357 = sphi 0, %s355
      %s358 = sphi 0, %s357
      %s372 = sphi 0, %s358
      %s376 = sphi 0, %s376
      %s378 = sphi 0, %s376
      %s379 = sphi 0, %s378
      %s393 = sphi 0, %s379
      %s399 = sphi 0, %s401
      %s402 = sphi 0, %s399
      %s403 = sphi 0, %s402
      %s419 = sphi 0, %s403
    $region4: #{_autoencoder_pallas.1} parent=1 // loop_header_branch
      %30 = sbr.rel (%p28) target = $region8
    $region5: #{_autoencoder_pallas.1} parent=1 // loop_body
      %s32 = ssub.s32 %s27, 1
      %s33 = ssub.s32 %s27, 2
      %s34 = sadd.s32 %s27, 1
      %s35 = ssub.s32 %s27, %s34
      %p36 = scmp.eq.s32.totalorder %s35, 0
      %s38 = sadd.s32 %s37, 1
      %s39 = scalar_select %p36, %s37, %s38
      %p42 = pneg %p36
      %p43 = scmp.eq.s32.totalorder %s27, 1
      %p44 = por %p42, %p43
      %p45 = scmp.ne.s32.totalorder %s37, %s40
      %p46 = scmp.eq.s32.totalorder %s27, 0
      %p47 = por %p45, %p46
      %p48 = scmp.ne.s32.totalorder %s37, %s40
      %p49 = scmp.eq.s32.totalorder %s32, 1
      %p50 = por %p48, %p49
      %p51 = scmp.ne.s32.totalorder %s40, %s41
      %p52 = scmp.eq.s32.totalorder %s32, 0
      %p53 = por %p51, %p52
      %p54 = scmp.ne.s32.totalorder %s40, %s41
      %p55 = scmp.eq.s32.totalorder %s33, 1
      %p56 = por %p54, %p55
      %p58 = scmp.ne.s32.totalorder %s41, %s57
      %p59 = scmp.eq.s32.totalorder %s33, 0
      %p60 = por %p58, %p59
      %s62 = sadd.s32 %s61, 1
      %p65 = scmp.eq.s32.totalorder %s27, 1
      %p66 = scmp.ne.s32.totalorder %s61, %s63
      %p67 = scmp.eq.s32.totalorder %s27, 0
      %p68 = por %p66, %p67
      %p69 = scmp.ne.s32.totalorder %s61, %s63
      %p70 = scmp.eq.s32.totalorder %s32, 1
      %p71 = por %p69, %p70
      %p72 = scmp.ne.s32.totalorder %s63, %s64
      %p73 = scmp.eq.s32.totalorder %s32, 0
      %p74 = por %p72, %p73
      %p75 = scmp.ne.s32.totalorder %s63, %s64
      %p76 = scmp.eq.s32.totalorder %s33, 1
      %p77 = por %p75, %p76
      %p79 = scmp.ne.s32.totalorder %s64, %s78
      %p80 = scmp.eq.s32.totalorder %s33, 0
      %p81 = por %p79, %p80
      %s83 = sadd.s32 %s82, 1
      %p86 = scmp.eq.s32.totalorder %s27, 1
      %p87 = scmp.ne.s32.totalorder %s82, %s84
      %p88 = scmp.eq.s32.totalorder %s27, 0
      %p89 = por %p87, %p88
      %p90 = scmp.ne.s32.totalorder %s82, %s84
      %p91 = scmp.eq.s32.totalorder %s32, 1
      %p92 = por %p90, %p91
      %p93 = scmp.ne.s32.totalorder %s84, %s85
      %p94 = scmp.eq.s32.totalorder %s32, 0
      %p95 = por %p93, %p94
      %p96 = scmp.ne.s32.totalorder %s84, %s85
      %p97 = scmp.eq.s32.totalorder %s33, 1
      %p98 = por %p96, %p97
      %p100 = scmp.ne.s32.totalorder %s85, %s99
      %p101 = scmp.eq.s32.totalorder %s33, 0
      %p102 = por %p100, %p101
      %s104 = sadd.s32 %s103, 1
      %p107 = scmp.eq.s32.totalorder %s27, 1
      %p108 = scmp.ne.s32.totalorder %s103, %s105
      %p109 = scmp.eq.s32.totalorder %s27, 0
      %p110 = por %p108, %p109
      %p111 = scmp.ne.s32.totalorder %s103, %s105
      %p112 = scmp.eq.s32.totalorder %s32, 1
      %p113 = por %p111, %p112
      %p114 = scmp.ne.s32.totalorder %s105, %s106
      %p115 = scmp.eq.s32.totalorder %s32, 0
      %p116 = por %p114, %p115
      %p117 = scmp.ne.s32.totalorder %s105, %s106
      %p118 = scmp.eq.s32.totalorder %s33, 1
      %p119 = por %p117, %p118
      %p121 = scmp.ne.s32.totalorder %s106, %s120
      %p122 = scmp.eq.s32.totalorder %s33, 0
      %p123 = por %p121, %p122
      %s125 = sadd.s32 %s124, 1
      %p128 = scmp.eq.s32.totalorder %s27, 1
      %p129 = scmp.ne.s32.totalorder %s124, %s126
      %p130 = scmp.eq.s32.totalorder %s27, 0
      %p131 = por %p129, %p130
      %p132 = scmp.ne.s32.totalorder %s124, %s126
      %p133 = scmp.eq.s32.totalorder %s32, 1
      %p134 = por %p132, %p133
      %p135 = scmp.ne.s32.totalorder %s126, %s127
      %p136 = scmp.eq.s32.totalorder %s32, 0
      %p137 = por %p135, %p136
      %p138 = scmp.ne.s32.totalorder %s126, %s127
      %p139 = scmp.eq.s32.totalorder %s33, 1
      %p140 = por %p138, %p139
      %p142 = scmp.ne.s32.totalorder %s127, %s141
      %p143 = scmp.eq.s32.totalorder %s33, 0
      %p144 = por %p142, %p143
      %s146 = sadd.s32 %s145, 1
      %p149 = scmp.eq.s32.totalorder %s27, 1
      %p150 = scmp.ne.s32.totalorder %s145, %s147
      %p151 = scmp.eq.s32.totalorder %s27, 0
      %p152 = por %p150, %p151
      %p153 = scmp.ne.s32.totalorder %s145, %s147
      %p154 = scmp.eq.s32.totalorder %s32, 1
      %p155 = por %p153, %p154
      %p156 = scmp.ne.s32.totalorder %s147, %s148
      %p157 = scmp.eq.s32.totalorder %s32, 0
      %p158 = por %p156, %p157
      %p159 = scmp.ne.s32.totalorder %s147, %s148
      %p160 = scmp.eq.s32.totalorder %s33, 1
      %p161 = por %p159, %p160
      %p163 = scmp.ne.s32.totalorder %s148, %s162
      %p164 = scmp.eq.s32.totalorder %s33, 0
      %p165 = por %p163, %p164
      %s167 = sadd.s32 %s166, 1
      %p170 = scmp.eq.s32.totalorder %s27, 1
      %p171 = scmp.ne.s32.totalorder %s166, %s168
      %p172 = scmp.eq.s32.totalorder %s27, 0
      %p173 = por %p171, %p172
      %p174 = scmp.ne.s32.totalorder %s166, %s168
      %p175 = scmp.eq.s32.totalorder %s32, 1
      %p176 = por %p174, %p175
      %p177 = scmp.ne.s32.totalorder %s168, %s169
      %p178 = scmp.eq.s32.totalorder %s32, 0
      %p179 = por %p177, %p178
      %p180 = scmp.ne.s32.totalorder %s168, %s169
      %p181 = scmp.eq.s32.totalorder %s33, 1
      %p182 = por %p180, %p181
      %p184 = scmp.ne.s32.totalorder %s169, %s183
      %p185 = scmp.eq.s32.totalorder %s33, 0
      %p186 = por %p184, %p185
      %s188 = sadd.s32 %s187, 1
      %p191 = scmp.eq.s32.totalorder %s27, 1
      %p192 = scmp.ne.s32.totalorder %s187, %s189
      %p193 = scmp.eq.s32.totalorder %s27, 0
      %p194 = por %p192, %p193
      %p195 = scmp.ne.s32.totalorder %s187, %s189
      %p196 = scmp.eq.s32.totalorder %s32, 1
      %p197 = por %p195, %p196
      %p198 = scmp.ne.s32.totalorder %s189, %s190
      %p199 = scmp.eq.s32.totalorder %s32, 0
      %p200 = por %p198, %p199
      %p201 = scmp.ne.s32.totalorder %s189, %s190
      %p202 = scmp.eq.s32.totalorder %s33, 1
      %p203 = por %p201, %p202
      %p205 = scmp.ne.s32.totalorder %s190, %s204
      %p206 = scmp.eq.s32.totalorder %s33, 0
      %p207 = por %p205, %p206
      %s209 = sadd.s32 %s208, 1
      %p212 = scmp.eq.s32.totalorder %s27, 1
      %p213 = scmp.ne.s32.totalorder %s208, %s210
      %p214 = scmp.eq.s32.totalorder %s27, 0
      %p215 = por %p213, %p214
      %p216 = scmp.ne.s32.totalorder %s208, %s210
      %p217 = scmp.eq.s32.totalorder %s32, 1
      %p218 = por %p216, %p217
      %p219 = scmp.ne.s32.totalorder %s210, %s211
      %p220 = scmp.eq.s32.totalorder %s32, 0
      %p221 = por %p219, %p220
      %p222 = scmp.ne.s32.totalorder %s210, %s211
      %p223 = scmp.eq.s32.totalorder %s33, 1
      %p224 = por %p222, %p223
      %p226 = scmp.ne.s32.totalorder %s211, %s225
      %p227 = scmp.eq.s32.totalorder %s33, 0
      %p228 = por %p226, %p227
      %s230 = sadd.s32 %s229, 1
      %p233 = scmp.eq.s32.totalorder %s27, 1
      %p234 = scmp.ne.s32.totalorder %s229, %s231
      %p235 = scmp.eq.s32.totalorder %s27, 0
      %p236 = por %p234, %p235
      %p237 = scmp.ne.s32.totalorder %s229, %s231
      %p238 = scmp.eq.s32.totalorder %s32, 1
      %p239 = por %p237, %p238
      %p240 = scmp.ne.s32.totalorder %s231, %s232
      %p241 = scmp.eq.s32.totalorder %s32, 0
      %p242 = por %p240, %p241
      %p243 = scmp.ne.s32.totalorder %s231, %s232
      %p244 = scmp.eq.s32.totalorder %s33, 1
      %p245 = por %p243, %p244
      %p247 = scmp.ne.s32.totalorder %s232, %s246
      %p248 = scmp.eq.s32.totalorder %s33, 0
      %p249 = por %p247, %p248
      %s251 = sadd.s32 %s250, 1
      %p254 = scmp.eq.s32.totalorder %s27, 1
      %p255 = scmp.ne.s32.totalorder %s250, %s252
      %p256 = scmp.eq.s32.totalorder %s27, 0
      %p257 = por %p255, %p256
      %p258 = scmp.ne.s32.totalorder %s250, %s252
      %p259 = scmp.eq.s32.totalorder %s32, 1
      %p260 = por %p258, %p259
      %p261 = scmp.ne.s32.totalorder %s252, %s253
      %p262 = scmp.eq.s32.totalorder %s32, 0
      %p263 = por %p261, %p262
      %p264 = scmp.ne.s32.totalorder %s252, %s253
      %p265 = scmp.eq.s32.totalorder %s33, 1
      %p266 = por %p264, %p265
      %p268 = scmp.ne.s32.totalorder %s253, %s267
      %p269 = scmp.eq.s32.totalorder %s33, 0
      %p270 = por %p268, %p269
      %s272 = sadd.s32 %s271, 1
      %p275 = scmp.eq.s32.totalorder %s27, 1
      %p276 = scmp.ne.s32.totalorder %s271, %s273
      %p277 = scmp.eq.s32.totalorder %s27, 0
      %p278 = por %p276, %p277
      %p279 = scmp.ne.s32.totalorder %s271, %s273
      %p280 = scmp.eq.s32.totalorder %s32, 1
      %p281 = por %p279, %p280
      %p282 = scmp.ne.s32.totalorder %s273, %s274
      %p283 = scmp.eq.s32.totalorder %s32, 0
      %p284 = por %p282, %p283
      %p285 = scmp.ne.s32.totalorder %s273, %s274
      %p286 = scmp.eq.s32.totalorder %s33, 1
      %p287 = por %p285, %p286
      %p289 = scmp.ne.s32.totalorder %s274, %s288
      %p290 = scmp.eq.s32.totalorder %s33, 0
      %p291 = por %p289, %p290
      %s293 = sadd.s32 %s292, 1
      %p296 = scmp.eq.s32.totalorder %s27, 1
      %p297 = scmp.ne.s32.totalorder %s292, %s294
      %p298 = scmp.eq.s32.totalorder %s27, 0
      %p299 = por %p297, %p298
      %p300 = scmp.ne.s32.totalorder %s292, %s294
      %p301 = scmp.eq.s32.totalorder %s32, 1
      %p302 = por %p300, %p301
      %p303 = scmp.ne.s32.totalorder %s294, %s295
      %p304 = scmp.eq.s32.totalorder %s32, 0
      %p305 = por %p303, %p304
      %p306 = scmp.ne.s32.totalorder %s294, %s295
      %p307 = scmp.eq.s32.totalorder %s33, 1
      %p308 = por %p306, %p307
      %p310 = scmp.ne.s32.totalorder %s295, %s309
      %p311 = scmp.eq.s32.totalorder %s33, 0
      %p312 = por %p310, %p311
      %s314 = sadd.s32 %s313, 1
      %p317 = scmp.eq.s32.totalorder %s27, 1
      %p318 = scmp.ne.s32.totalorder %s313, %s315
      %p319 = scmp.eq.s32.totalorder %s27, 0
      %p320 = por %p318, %p319
      %p321 = scmp.ne.s32.totalorder %s313, %s315
      %p322 = scmp.eq.s32.totalorder %s32, 1
      %p323 = por %p321, %p322
      %p324 = scmp.ne.s32.totalorder %s315, %s316
      %p325 = scmp.eq.s32.totalorder %s32, 0
      %p326 = por %p324, %p325
      %p327 = scmp.ne.s32.totalorder %s315, %s316
      %p328 = scmp.eq.s32.totalorder %s33, 1
      %p329 = por %p327, %p328
      %p331 = scmp.ne.s32.totalorder %s316, %s330
      %p332 = scmp.eq.s32.totalorder %s33, 0
      %p333 = por %p331, %p332
      %s335 = sadd.s32 %s334, 1
      %p338 = scmp.eq.s32.totalorder %s27, 1
      %p339 = scmp.ne.s32.totalorder %s334, %s336
      %p340 = scmp.eq.s32.totalorder %s27, 0
      %p341 = por %p339, %p340
      %p342 = scmp.ne.s32.totalorder %s334, %s336
      %p343 = scmp.eq.s32.totalorder %s32, 1
      %p344 = por %p342, %p343
      %p345 = scmp.ne.s32.totalorder %s336, %s337
      %p346 = scmp.eq.s32.totalorder %s32, 0
      %p347 = por %p345, %p346
      %p348 = scmp.ne.s32.totalorder %s336, %s337
      %p349 = scmp.eq.s32.totalorder %s33, 1
      %p350 = por %p348, %p349
      %p352 = scmp.ne.s32.totalorder %s337, %s351
      %p353 = scmp.eq.s32.totalorder %s33, 0
      %p354 = por %p352, %p353
      %s356 = sadd.s32 %s355, 1
      %p359 = scmp.eq.s32.totalorder %s27, 1
      %p360 = scmp.ne.s32.totalorder %s355, %s357
      %p361 = scmp.eq.s32.totalorder %s27, 0
      %p362 = por %p360, %p361
      %p363 = scmp.ne.s32.totalorder %s355, %s357
      %p364 = scmp.eq.s32.totalorder %s32, 1
      %p365 = por %p363, %p364
      %p366 = scmp.ne.s32.totalorder %s357, %s358
      %p367 = scmp.eq.s32.totalorder %s32, 0
      %p368 = por %p366, %p367
      %p369 = scmp.ne.s32.totalorder %s357, %s358
      %p370 = scmp.eq.s32.totalorder %s33, 1
      %p371 = por %p369, %p370
      %p373 = scmp.ne.s32.totalorder %s358, %s372
      %p374 = scmp.eq.s32.totalorder %s33, 0
      %p375 = por %p373, %p374
      %s377 = sadd.s32 %s376, 1
      %p380 = scmp.eq.s32.totalorder %s27, 1
      %p381 = scmp.ne.s32.totalorder %s376, %s378
      %p382 = scmp.eq.s32.totalorder %s27, 0
      %p383 = por %p381, %p382
      %p384 = scmp.ne.s32.totalorder %s376, %s378
      %p385 = scmp.eq.s32.totalorder %s32, 1
      %p386 = por %p384, %p385
      %p387 = scmp.ne.s32.totalorder %s378, %s379
      %p388 = scmp.eq.s32.totalorder %s32, 0
      %p389 = por %p387, %p388
      %p390 = scmp.ne.s32.totalorder %s378, %s379
      %p391 = scmp.eq.s32.totalorder %s33, 1
      %p392 = por %p390, %p391
      %p394 = scmp.ne.s32.totalorder %s379, %s393
      %p395 = scmp.eq.s32.totalorder %s33, 0
      %p396 = por %p394, %p395
      %s397 = ssub.s32 %s27, %s34
      %p398 = scmp.eq.s32.totalorder %s397, 0
      %s400 = sadd.s32 %s399, 1
      %s401 = scalar_select %p398, %s399, %s400
      %p404 = pneg %p398
      %p405 = scmp.eq.s32.totalorder %s27, 1
      %p406 = por %p404, %p405
      %p407 = scmp.ne.s32.totalorder %s399, %s402
      %p408 = scmp.eq.s32.totalorder %s27, 0
      %p409 = por %p407, %p408
      %p410 = scmp.ne.s32.totalorder %s399, %s402
      %p411 = scmp.eq.s32.totalorder %s32, 1
      %p412 = por %p410, %p411
      %p413 = scmp.ne.s32.totalorder %s402, %s403
      %p414 = scmp.eq.s32.totalorder %s32, 0
      %p415 = por %p413, %p414
      %p416 = scmp.ne.s32.totalorder %s402, %s403
      %p417 = scmp.eq.s32.totalorder %s33, 1
      %p418 = por %p416, %p417
      %p420 = scmp.ne.s32.totalorder %s403, %s419
      %p421 = scmp.eq.s32.totalorder %s33, 0
      %p422 = por %p420, %p421
      %p423 = scmp.le.s32.totalorder 1, %s27
      %p424 = scmp.lt.s32.totalorder %s27, 3
      %p425 = pnand %p423, %p424
      %p426 = pneg %p425
      // Predicated region
      $region9: #{_autoencoder_pallas.1} parent=5 // pred_check
        _
      $region10: #{_autoencoder_pallas.1} parent=5 // pred_check_branch
        %428 = sbr.rel (%p425) target = $region12
      $region11: #{_autoencoder_pallas.1} parent=5 // pred_region
        %s429 = ssub.s32 %s27, 1
        // Predicated region
        $region13: #{_autoencoder_pallas.1} parent=11 // pred_check
          %p430 = pneg %p74
        $region14: #{_autoencoder_pallas.1} parent=11 // pred_check_branch
          %432 = sbr.rel (%p430) target = $region16
        $region15: #{_autoencoder_pallas.1} parent=11 // pred_region
          _
        $region16: #{_autoencoder_pallas.1} parent=11 // pred_fallthru
          _
        // Predicated region
        $region17: #{_autoencoder_pallas.1} parent=11 // pred_check
          %p433 = pneg %p95
        $region18: #{_autoencoder_pallas.1} parent=11 // pred_check_branch
          %435 = sbr.rel (%p433) target = $region20
        $region19: #{_autoencoder_pallas.1} parent=11 // pred_region
          _
        $region20: #{_autoencoder_pallas.1} parent=11 // pred_fallthru
          _
        // Predicated region
        $region21: #{_autoencoder_pallas.1} parent=11 // pred_check
          %p436 = pneg %p116
        $region22: #{_autoencoder_pallas.1} parent=11 // pred_check_branch
          %438 = sbr.rel (%p436) target = $region24
        $region23: #{_autoencoder_pallas.1} parent=11 // pred_region
          _
        $region24: #{_autoencoder_pallas.1} parent=11 // pred_fallthru
          _
        // Predicated region
        $region25: #{_autoencoder_pallas.1} parent=11 // pred_check
          %p439 = pneg %p137
        $region26: #{_autoencoder_pallas.1} parent=11 // pred_check_branch
          %441 = sbr.rel (%p439) target = $region28
        $region27: #{_autoencoder_pallas.1} parent=11 // pred_region
          _
        $region28: #{_autoencoder_pallas.1} parent=11 // pred_fallthru
          _
        // Predicated region
        $region29: #{_autoencoder_pallas.1} parent=11 // pred_check
          %p442 = pneg %p158
        $region30: #{_autoencoder_pallas.1} parent=11 // pred_check_branch
          %444 = sbr.rel (%p442) target = $region32
        $region31: #{_autoencoder_pallas.1} parent=11 // pred_region
          _
        $region32: #{_autoencoder_pallas.1} parent=11 // pred_fallthru
          _
        // Predicated region
        $region33: #{_autoencoder_pallas.1} parent=11 // pred_check
          %p445 = pneg %p179
        $region34: #{_autoencoder_pallas.1} parent=11 // pred_check_branch
          %447 = sbr.rel (%p445) target = $region36
        $region35: #{_autoencoder_pallas.1} parent=11 // pred_region
          _
        $region36: #{_autoencoder_pallas.1} parent=11 // pred_fallthru
          _
        // Predicated region
        $region37: #{_autoencoder_pallas.1} parent=11 // pred_check
          %p448 = pneg %p200
        $region38: #{_autoencoder_pallas.1} parent=11 // pred_check_branch
          %450 = sbr.rel (%p448) target = $region40
        $region39: #{_autoencoder_pallas.1} parent=11 // pred_region
          _
        $region40: #{_autoencoder_pallas.1} parent=11 // pred_fallthru
          _
        // Predicated region
        $region41: #{_autoencoder_pallas.1} parent=11 // pred_check
          %p451 = pneg %p221
        $region42: #{_autoencoder_pallas.1} parent=11 // pred_check_branch
          %453 = sbr.rel (%p451) target = $region44
        $region43: #{_autoencoder_pallas.1} parent=11 // pred_region
          _
        $region44: #{_autoencoder_pallas.1} parent=11 // pred_fallthru
          _
        // Predicated region
        $region45: #{_autoencoder_pallas.1} parent=11 // pred_check
          %p454 = pneg %p242
        $region46: #{_autoencoder_pallas.1} parent=11 // pred_check_branch
          %456 = sbr.rel (%p454) target = $region48
        $region47: #{_autoencoder_pallas.1} parent=11 // pred_region
          _
        $region48: #{_autoencoder_pallas.1} parent=11 // pred_fallthru
          _
        // Predicated region
        $region49: #{_autoencoder_pallas.1} parent=11 // pred_check
          %p457 = pneg %p263
        $region50: #{_autoencoder_pallas.1} parent=11 // pred_check_branch
          %459 = sbr.rel (%p457) target = $region52
        $region51: #{_autoencoder_pallas.1} parent=11 // pred_region
          _
        $region52: #{_autoencoder_pallas.1} parent=11 // pred_fallthru
          _
        // Predicated region
        $region53: #{_autoencoder_pallas.1} parent=11 // pred_check
          %p460 = pneg %p284
        $region54: #{_autoencoder_pallas.1} parent=11 // pred_check_branch
          %462 = sbr.rel (%p460) target = $region56
        $region55: #{_autoencoder_pallas.1} parent=11 // pred_region
          _
        $region56: #{_autoencoder_pallas.1} parent=11 // pred_fallthru
          _
        // Predicated region
        $region57: #{_autoencoder_pallas.1} parent=11 // pred_check
          %p463 = pneg %p305
        $region58: #{_autoencoder_pallas.1} parent=11 // pred_check_branch
          %465 = sbr.rel (%p463) target = $region60
        $region59: #{_autoencoder_pallas.1} parent=11 // pred_region
          _
        $region60: #{_autoencoder_pallas.1} parent=11 // pred_fallthru
          _
        // Predicated region
        $region61: #{_autoencoder_pallas.1} parent=11 // pred_check
          %p466 = pneg %p326
        $region62: #{_autoencoder_pallas.1} parent=11 // pred_check_branch
          %468 = sbr.rel (%p466) target = $region64
        $region63: #{_autoencoder_pallas.1} parent=11 // pred_region
          %s470 = ssub.s32 1024, 1024
          %471 = vsyncadd [#allocation3], %s470
          %s472 = sshll.u32 [#allocation2], 4
          %s473 = int_to_ptr.vmem [resolvable:$true] %s472
          %478 = dma.hbm_to_vmem [thread:$0]  %s13, 1024, %s473, [#allocation3], 64, 64, 4
        $region64: #{_autoencoder_pallas.1} parent=11 // pred_fallthru
          _
        // Predicated region
        $region65: #{_autoencoder_pallas.1} parent=11 // pred_check
          %p479 = pneg %p347
        $region66: #{_autoencoder_pallas.1} parent=11 // pred_check_branch
          %481 = sbr.rel (%p479) target = $region68
        $region67: #{_autoencoder_pallas.1} parent=11 // pred_region
          _
        $region68: #{_autoencoder_pallas.1} parent=11 // pred_fallthru
          _
        // Predicated region
        $region69: #{_autoencoder_pallas.1} parent=11 // pred_check
          %p482 = pneg %p368
        $region70: #{_autoencoder_pallas.1} parent=11 // pred_check_branch
          %484 = sbr.rel (%p482) target = $region72
        $region71: #{_autoencoder_pallas.1} parent=11 // pred_region
          _
        $region72: #{_autoencoder_pallas.1} parent=11 // pred_fallthru
          _
        // Predicated region
        $region73: #{_autoencoder_pallas.1} parent=11 // pred_check
          %p485 = pneg %p389
        $region74: #{_autoencoder_pallas.1} parent=11 // pred_check_branch
          %487 = sbr.rel (%p485) target = $region76
        $region75: #{_autoencoder_pallas.1} parent=11 // pred_region
          _
        $region76: #{_autoencoder_pallas.1} parent=11 // pred_fallthru
          _
      $region12: #{_autoencoder_pallas.1} parent=5 // pred_fallthru
        _
      %p488 = scmp.lt.s32.totalorder %s27, 2
      // Predicated region
      $region77: #{_autoencoder_pallas.1} parent=5 // pred_check
        %p489 = pneg %p488
      $region78: #{_autoencoder_pallas.1} parent=5 // pred_check_branch
        %491 = sbr.rel (%p489) target = $region80
      $region79: #{_autoencoder_pallas.1} parent=5 // pred_region
        // Predicated region
        $region81: #{_autoencoder_pallas.1} parent=79 // pred_check
          %p492 = pneg %p47
        $region82: #{_autoencoder_pallas.1} parent=79 // pred_check_branch
          %494 = sbr.rel (%p492) target = $region84
        $region83: #{_autoencoder_pallas.1} parent=79 // pred_region
          %s495 = smul.u32 2, %s27
          %p496 = scmp.lt.s32.totalorder %s495, 3
          %s497 = scalar_select %p496, %s495, 3
          %s498 = smul.addr %s497, 7
          %s499 = smul.addr %s498, 4
          %s500 = scalar_lea.vmem %s0, %s499
          %s501 = smul.u32 2, %s27
        $region84: #{_autoencoder_pallas.1} parent=79 // pred_fallthru
          _
      $region80: #{_autoencoder_pallas.1} parent=5 // pred_fallthru
        _
      %p502 = scmp.le.s32.totalorder 1, %s27
      %p503 = scmp.lt.s32.totalorder %s27, 3
      %p504 = pnand %p502, %p503
      %p505 = pneg %p504
      // Predicated region
      $region85: #{_autoencoder_pallas.1} parent=5 // pred_check
        _
      $region86: #{_autoencoder_pallas.1} parent=5 // pred_check_branch
        %507 = sbr.rel (%p504) target = $region88
      $region87: #{_autoencoder_pallas.1} parent=5 // pred_region
        %s508 = ssub.s32 %s27, 1
        // Predicated region
        $region89: #{_autoencoder_pallas.1} parent=87 // pred_check
          %p509 = pneg %p326
        $region90: #{_autoencoder_pallas.1} parent=87 // pred_check_branch
          %511 = sbr.rel (%p509) target = $region92
        $region91: #{_autoencoder_pallas.1} parent=87 // pred_region
          %512 = dma.done [#allocation3], 1024
        $region92: #{_autoencoder_pallas.1} parent=87 // pred_fallthru
          _
        %s513 = smul.u32 2, %s32
        %p514 = scmp.lt.s32.totalorder %s513, 3
        %s515 = scalar_select %p514, %s513, 3
        %s516 = smul.addr %s515, 7
        %s517 = smul.addr %s516, 4
        %s518 = scalar_lea.vmem %s0, %s517
        %p519 = pneg %p53
        %p520 = pneg %p50
        %p521 = pneg %p74
        %p522 = pneg %p71
        %p523 = pneg %p95
        %p524 = pneg %p92
        %p525 = pneg %p116
        %p526 = pneg %p113
        %p527 = pneg %p137
        %p528 = pneg %p134
        %p529 = pneg %p158
        %p530 = pneg %p155
        %p531 = pneg %p179
        %p532 = pneg %p176
        %p533 = pneg %p200
        %p534 = pneg %p197
        %p535 = pneg %p221
        %p536 = pneg %p218
        %p537 = pneg %p242
        %p538 = pneg %p239
        %p539 = pneg %p263
        %p540 = pneg %p260
        %p541 = pneg %p284
        %p542 = pneg %p281
        %p543 = pneg %p305
        %p544 = pneg %p302
        %p545 = pneg %p326
        %p546 = pneg %p323
        %p547 = pneg %p347
        %p548 = pneg %p344
        %p549 = pneg %p368
        %p550 = pneg %p365
        %p551 = pneg %p389
        %p552 = pneg %p386
        %p553 = pneg %p415
        %p554 = pneg %p412
        %s555 = sand.u32 %s402, 1
        %s556 = scalar_lea.sflag [#allocation4], %s555
        %s557 = sand.u32 %s402, 1
        %s558 = smul.addr %s557, 56
        %s559 = scalar_lea.vmem [#allocation5], %s558
        %s560 = smul.u32 2, %s32
        %p561 = scmp.lt.s32.totalorder %s560, 3
        %s562 = scalar_select %p561, %s560, 3
        %s563 = smul.addr %s562, 7
        %s564 = smul.addr %s563, 4
        %s565 = scalar_lea.vmem %s0, %s564
        %s566 = smul.u32 2, %s32
        %s567 = smul.u32 2, %s32
        %v569 = vld [vmem:[%s565] sm:$0xff]
        %v570 = vld [vmem:[%s565 + $0x8] sm:$0xff]
        %v571 = vld [vmem:[%s565 + $0x10] sm:$0xff]
        %v572 = vld [vmem:[%s565 + $0x18] sm:$0xf]
        %v573 = vld [vmem:[%s565 + $0x1c] sm:$0xff]
        %v574 = vld [vmem:[%s565 + $0x24] sm:$0xff]
        %v575 = vld [vmem:[%s565 + $0x2c] sm:$0xff]
        %v576 = vld [vmem:[%s565 + $0x34] sm:$0xf]
        %v577 = vld [vmem:[%s1] sm:$0xf]
        %v578 = vld [vmem:[%s1 + $0x4] sm:$0xf]
        %v579 = vld [vmem:[%s1 + $0x8] sm:$0xf]
        %v580 = vld [vmem:[%s1 + $0xc] sm:$0xf]
        %v581 = vld [vmem:[%s1 + $0x10] sm:$0xf]
        %v582 = vld [vmem:[%s1 + $0x14] sm:$0xf]
        %v583 = vld [vmem:[%s1 + $0x18] sm:$0xf]
        %v584 = vld [vmem:[%s1 + $0x1c] sm:$0xf]
        %v585 = vld [vmem:[%s1 + $0x20] sm:$0xf]
        %v586 = vld [vmem:[%s1 + $0x24] sm:$0xf]
        %v587 = vld [vmem:[%s1 + $0x28] sm:$0xf]
        %v588 = vld [vmem:[%s1 + $0x2c] sm:$0xf]
        %v589 = vld [vmem:[%s1 + $0x30] sm:$0xf]
        %v590 = vld [vmem:[%s1 + $0x34] sm:$0xf]
        %v591 = vld [vmem:[%s1 + $0x38] sm:$0xf]
        %v592 = vld [vmem:[%s1 + $0x3c] sm:$0xf]
        %v593 = vld [vmem:[%s1 + $0x40] sm:$0xf]
        %v594 = vld [vmem:[%s1 + $0x44] sm:$0xf]
        %v595 = vld [vmem:[%s1 + $0x48] sm:$0xf]
        %v596 = vld [vmem:[%s1 + $0x4c] sm:$0xf]
        %v597 = vld [vmem:[%s1 + $0x50] sm:$0xf]
        %v598 = vld [vmem:[%s1 + $0x54] sm:$0xf]
        %v599 = vld [vmem:[%s1 + $0x58] sm:$0xf]
        %v600 = vld [vmem:[%s1 + $0x5c] sm:$0xf]
        %v601 = vld [vmem:[%s1 + $0x60] sm:$0xf]
        %v602 = vld [vmem:[%s1 + $0x64] sm:$0xf]
        %v603 = vld [vmem:[%s1 + $0x68] sm:$0xf]
        %v604 = vld [vmem:[%s1 + $0x6c] sm:$0xf]
        %v605 = vld [vmem:[%s1 + $0x70] sm:$0xf]
        %v606 = vld [vmem:[%s1 + $0x74] sm:$0xf]
        %v607 = vld [vmem:[%s1 + $0x78] sm:$0xf]
        %v608 = vld [vmem:[%s1 + $0x7c] sm:$0xf]
        %v609 = vld [vmem:[%s1 + $0x80] sm:$0xf]
        %v610 = vld [vmem:[%s1 + $0x84] sm:$0xf]
        %v611 = vld [vmem:[%s1 + $0x88] sm:$0xf]
        %v612 = vld [vmem:[%s1 + $0x8c] sm:$0xf]
        %v613 = vld [vmem:[%s1 + $0x90] sm:$0xf]
        %v614 = vld [vmem:[%s1 + $0x94] sm:$0xf]
        %v615 = vld [vmem:[%s1 + $0x98] sm:$0xf]
        %v616 = vld [vmem:[%s1 + $0x9c] sm:$0xf]
        %v617 = vld [vmem:[%s1 + $0xa0] sm:$0xf]
        %v618 = vld [vmem:[%s1 + $0xa4] sm:$0xf]
        %v619 = vld [vmem:[%s1 + $0xa8] sm:$0xf]
        %v620 = vld [vmem:[%s1 + $0xac] sm:$0xf]
        %v621 = vld [vmem:[%s1 + $0xb0] sm:$0xf]
        %v622 = vld [vmem:[%s1 + $0xb4] sm:$0xf]
        %v623 = vld [vmem:[%s1 + $0xb8] sm:$0xf]
        %v624 = vld [vmem:[%s1 + $0xbc] sm:$0xf]
        %v625 = vld [vmem:[%s1 + $0xc0] sm:$0xf]
        %v626 = vld [vmem:[%s1 + $0xc4] sm:$0xf]
        %v627 = vld [vmem:[%s1 + $0xc8] sm:$0xf]
        %v628 = vld [vmem:[%s1 + $0xcc] sm:$0xf]
        %v629 = vld [vmem:[%s1 + $0xd0] sm:$0xf]
        %v630 = vld [vmem:[%s1 + $0xd4] sm:$0xf]
        %v631 = vld [vmem:[%s1 + $0xd8] sm:$0xf]
        %v632 = vld [vmem:[%s1 + $0xdc] sm:$0xf]
        %v633 = vld [vmem:[%s1 + $0xe0] sm:$0xf]
        %v634 = vld [vmem:[%s1 + $0xe4] sm:$0xf]
        %v635 = vld [vmem:[%s1 + $0xe8] sm:$0xf]
        %v636 = vld [vmem:[%s1 + $0xec] sm:$0xf]
        %v637 = vld [vmem:[%s1 + $0xf0] sm:$0xf]
        %v638 = vld [vmem:[%s1 + $0xf4] sm:$0xf]
        %v639 = vld [vmem:[%s1 + $0xf8] sm:$0xf]
        %v640 = vld [vmem:[%s1 + $0xfc] sm:$0xf]
        %v641 = vld [vmem:[%s1 + $0x100] sm:$0xf]
        %v642 = vld [vmem:[%s1 + $0x104] sm:$0xf]
        %v643 = vld [vmem:[%s1 + $0x108] sm:$0xf]
        %v644 = vld [vmem:[%s1 + $0x10c] sm:$0xf]
        %v645 = vld [vmem:[%s1 + $0x110] sm:$0xf]
        %v646 = vld [vmem:[%s1 + $0x114] sm:$0xf]
        %v647 = vld [vmem:[%s1 + $0x118] sm:$0xf]
        %v648 = vld [vmem:[%s1 + $0x11c] sm:$0xf]
        %v649 = vld [vmem:[%s1 + $0x120] sm:$0xf]
        %v650 = vld [vmem:[%s1 + $0x124] sm:$0xf]
        %v651 = vld [vmem:[%s1 + $0x128] sm:$0xf]
        %v652 = vld [vmem:[%s1 + $0x12c] sm:$0xf]
        %v653 = vld [vmem:[%s1 + $0x130] sm:$0xf]
        %v654 = vld [vmem:[%s1 + $0x134] sm:$0xf]
        %v655 = vld [vmem:[%s1 + $0x138] sm:$0xf]
        %v656 = vld [vmem:[%s1 + $0x13c] sm:$0xf]
        %v657 = vld [vmem:[%s1 + $0x140] sm:$0xf]
        %v658 = vld [vmem:[%s1 + $0x144] sm:$0xf]
        %v659 = vld [vmem:[%s1 + $0x148] sm:$0xf]
        %v660 = vld [vmem:[%s1 + $0x14c] sm:$0xf]
        %v661 = vld [vmem:[%s1 + $0x150] sm:$0xf]
        %v662 = vld [vmem:[%s1 + $0x154] sm:$0xf]
        %v663 = vld [vmem:[%s1 + $0x158] sm:$0xf]
        %v664 = vld [vmem:[%s1 + $0x15c] sm:$0xf]
        %v665 = vld [vmem:[%s1 + $0x160] sm:$0xf]
        %v666 = vld [vmem:[%s1 + $0x164] sm:$0xf]
        %v667 = vld [vmem:[%s1 + $0x168] sm:$0xf]
        %v668 = vld [vmem:[%s1 + $0x16c] sm:$0xf]
        %v669 = vld [vmem:[%s1 + $0x170] sm:$0xf]
        %v670 = vld [vmem:[%s1 + $0x174] sm:$0xf]
        %v671 = vld [vmem:[%s1 + $0x178] sm:$0xf]
        %v672 = vld [vmem:[%s1 + $0x17c] sm:$0xf]
        %v673 = vld [vmem:[%s1 + $0x180] sm:$0xf]
        %v674 = vld [vmem:[%s1 + $0x184] sm:$0xf]
        %v675 = vld [vmem:[%s2] sm:$0x1]
        %v677 = vlaneseq
        %v678 = vshrl.u32 %v677, 7
        %v679 = vsub.s32 0, %v678
        %v680 = vrot.slane %v675, %v679
        %v690 = vunpack.c.l.b16 %v569
        %v691 = vunpack.c.h.b16 %v569
        %v692 = vunpack.c.l.b16 %v570
        %v693 = vunpack.c.h.b16 %v570
        %v694 = vunpack.c.l.b16 %v571
        %v695 = vunpack.c.h.b16 %v571
        %v696 = vunpack.c.l.b16 %v572
        %v697 = vunpack.c.l.b16 %v573
        %v698 = vunpack.c.h.b16 %v573
        %v699 = vunpack.c.l.b16 %v574
        %v700 = vunpack.c.h.b16 %v574
        %v701 = vunpack.c.l.b16 %v575
        %v702 = vunpack.c.h.b16 %v575
        %v703 = vunpack.c.l.b16 %v576
        %v704 = vpack.c.b16 %v697, %v690
        %v705 = vpack.c.b16 %v698, %v691
        %v706 = vpack.c.b16 %v699, %v692
        %v707 = vpack.c.b16 %v700, %v693
        %v708 = vpack.c.b16 %v701, %v694
        %v709 = vpack.c.b16 %v702, %v695
        %v710 = vpack.c.b16 %v703, %v696
        %v815 = vunpack.c.l.b16 %v577
        %v816 = vunpack.c.l.b16 %v578
        %v817 = vunpack.c.l.b16 %v579
        %v818 = vunpack.c.l.b16 %v580
        %v819 = vunpack.c.l.b16 %v581
        %v820 = vunpack.c.l.b16 %v582
        %v821 = vunpack.c.l.b16 %v583
        %v822 = vunpack.c.l.b16 %v584
        %v823 = vunpack.c.l.b16 %v585
        %v824 = vunpack.c.l.b16 %v586
        %v825 = vunpack.c.l.b16 %v587
        %v826 = vunpack.c.l.b16 %v588
        %v827 = vunpack.c.l.b16 %v589
        %v828 = vunpack.c.l.b16 %v590
        %v829 = vunpack.c.l.b16 %v591
        %v830 = vunpack.c.l.b16 %v592
        %v831 = vunpack.c.l.b16 %v593
        %v832 = vunpack.c.l.b16 %v594
        %v833 = vunpack.c.l.b16 %v595
        %v834 = vunpack.c.l.b16 %v596
        %v835 = vunpack.c.l.b16 %v597
        %v836 = vunpack.c.l.b16 %v598
        %v837 = vunpack.c.l.b16 %v599
        %v838 = vunpack.c.l.b16 %v600
        %v839 = vunpack.c.l.b16 %v601
        %v840 = vunpack.c.l.b16 %v602
        %v841 = vunpack.c.l.b16 %v603
        %v842 = vunpack.c.l.b16 %v604
        %v843 = vunpack.c.l.b16 %v605
        %v844 = vunpack.c.l.b16 %v606
        %v845 = vunpack.c.l.b16 %v607
        %v846 = vunpack.c.l.b16 %v608
        %v847 = vunpack.c.l.b16 %v609
        %v848 = vunpack.c.l.b16 %v610
        %v849 = vunpack.c.l.b16 %v611
        %v850 = vunpack.c.l.b16 %v612
        %v851 = vunpack.c.l.b16 %v613
        %v852 = vunpack.c.l.b16 %v614
        %v853 = vunpack.c.l.b16 %v615
        %v854 = vunpack.c.l.b16 %v616
        %v855 = vunpack.c.l.b16 %v617
        %v856 = vunpack.c.l.b16 %v618
        %v857 = vunpack.c.l.b16 %v619
        %v858 = vunpack.c.l.b16 %v620
        %v859 = vunpack.c.l.b16 %v621
        %v860 = vunpack.c.l.b16 %v622
        %v861 = vunpack.c.l.b16 %v623
        %v862 = vunpack.c.l.b16 %v624
        %v863 = vunpack.c.l.b16 %v625
        %v864 = vunpack.c.l.b16 %v626
        %v865 = vunpack.c.l.b16 %v627
        %v866 = vunpack.c.l.b16 %v628
        %v867 = vunpack.c.l.b16 %v629
        %v868 = vunpack.c.l.b16 %v630
        %v869 = vunpack.c.l.b16 %v631
        %v870 = vunpack.c.l.b16 %v632
        %v871 = vunpack.c.l.b16 %v633
        %v872 = vunpack.c.l.b16 %v634
        %v873 = vunpack.c.l.b16 %v635
        %v874 = vunpack.c.l.b16 %v636
        %v875 = vunpack.c.l.b16 %v637
        %v876 = vunpack.c.l.b16 %v638
        %v877 = vunpack.c.l.b16 %v639
        %v878 = vunpack.c.l.b16 %v640
        %v879 = vunpack.c.l.b16 %v641
        %v880 = vunpack.c.l.b16 %v642
        %v881 = vunpack.c.l.b16 %v643
        %v882 = vunpack.c.l.b16 %v644
        %v883 = vunpack.c.l.b16 %v645
        %v884 = vunpack.c.l.b16 %v646
        %v885 = vunpack.c.l.b16 %v647
        %v886 = vunpack.c.l.b16 %v648
        %v887 = vunpack.c.l.b16 %v649
        %v888 = vunpack.c.l.b16 %v650
        %v889 = vunpack.c.l.b16 %v651
        %v890 = vunpack.c.l.b16 %v652
        %v891 = vunpack.c.l.b16 %v653
        %v892 = vunpack.c.l.b16 %v654
        %v893 = vunpack.c.l.b16 %v655
        %v894 = vunpack.c.l.b16 %v656
        %v895 = vunpack.c.l.b16 %v657
        %v896 = vunpack.c.l.b16 %v658
        %v897 = vunpack.c.l.b16 %v659
        %v898 = vunpack.c.l.b16 %v660
        %v899 = vunpack.c.l.b16 %v661
        %v900 = vunpack.c.l.b16 %v662
        %v901 = vunpack.c.l.b16 %v663
        %v902 = vunpack.c.l.b16 %v664
        %v903 = vunpack.c.l.b16 %v665
        %v904 = vunpack.c.l.b16 %v666
        %v905 = vunpack.c.l.b16 %v667
        %v906 = vunpack.c.l.b16 %v668
        %v907 = vunpack.c.l.b16 %v669
        %v908 = vunpack.c.l.b16 %v670
        %v909 = vunpack.c.l.b16 %v671
        %v910 = vunpack.c.l.b16 %v672
        %v911 = vunpack.c.l.b16 %v673
        %v912 = vunpack.c.l.b16 %v674
        %v913 = vpack.c.b16 %v816, %v815
        %v914 = vpack.c.b16 %v818, %v817
        %v915 = vpack.c.b16 %v820, %v819
        %v916 = vpack.c.b16 %v822, %v821
        %v917 = vpack.c.b16 %v824, %v823
        %v918 = vpack.c.b16 %v826, %v825
        %v919 = vpack.c.b16 %v828, %v827
        %v920 = vpack.c.b16 %v830, %v829
        %v921 = vpack.c.b16 %v832, %v831
        %v922 = vpack.c.b16 %v834, %v833
        %v923 = vpack.c.b16 %v836, %v835
        %v924 = vpack.c.b16 %v838, %v837
        %v925 = vpack.c.b16 %v840, %v839
        %v926 = vpack.c.b16 %v842, %v841
        %v927 = vpack.c.b16 %v844, %v843
        %v928 = vpack.c.b16 %v846, %v845
        %v929 = vpack.c.b16 %v848, %v847
        %v930 = vpack.c.b16 %v850, %v849
        %v931 = vpack.c.b16 %v852, %v851
        %v932 = vpack.c.b16 %v854, %v853
        %v933 = vpack.c.b16 %v856, %v855
        %v934 = vpack.c.b16 %v858, %v857
        %v935 = vpack.c.b16 %v860, %v859
        %v936 = vpack.c.b16 %v862, %v861
        %v937 = vpack.c.b16 %v864, %v863
        %v938 = vpack.c.b16 %v866, %v865
        %v939 = vpack.c.b16 %v868, %v867
        %v940 = vpack.c.b16 %v870, %v869
        %v941 = vpack.c.b16 %v872, %v871
        %v942 = vpack.c.b16 %v874, %v873
        %v943 = vpack.c.b16 %v876, %v875
        %v944 = vpack.c.b16 %v878, %v877
        %v945 = vpack.c.b16 %v880, %v879
        %v946 = vpack.c.b16 %v882, %v881
        %v947 = vpack.c.b16 %v884, %v883
        %v948 = vpack.c.b16 %v886, %v885
        %v949 = vpack.c.b16 %v888, %v887
        %v950 = vpack.c.b16 %v890, %v889
        %v951 = vpack.c.b16 %v892, %v891
        %v952 = vpack.c.b16 %v894, %v893
        %v953 = vpack.c.b16 %v896, %v895
        %v954 = vpack.c.b16 %v898, %v897
        %v955 = vpack.c.b16 %v900, %v899
        %v956 = vpack.c.b16 %v902, %v901
        %v957 = vpack.c.b16 %v904, %v903
        %v958 = vpack.c.b16 %v906, %v905
        %v959 = vpack.c.b16 %v908, %v907
        %v960 = vpack.c.b16 %v910, %v909
        %v961 = vpack.c.b16 %v912, %v911
        %vm1011 = vcmask 130048
        %v1013 = vsel %vm1011, %v710, 0
        %1015 = vmatprep.subr.bf16.mxu0 0
        %1016 = vmatpush1.bf16.msra.mxu0 %v913
        %1017 = vmatprep.subr.bf16.mxu0 0
        %1018 = vmatpush1.bf16.msra.mxu0 %v914
        %1019 = vmatprep.subr.bf16.mxu0 0
        %1020 = vmatpush1.bf16.msra.mxu0 %v915
        %1021 = vmatprep.subr.bf16.mxu0 0
        %1022 = vmatpush1.bf16.msra.mxu0 %v916
        %1023 = vmatprep.subr.bf16.mxu0 0
        %1024 = vmatpush1.bf16.msra.mxu0 %v917
        %1025 = vmatprep.subr.bf16.mxu0 0
        %1026 = vmatpush1.bf16.msra.mxu0 %v918
        %1027 = vmatprep.subr.bf16.mxu0 0
        %1028 = vmatpush1.bf16.msra.mxu0 %v919
        %1029 = vmatprep.subr.bf16.mxu0 0
        %1030 = vmatpush1.bf16.msra.mxu0 %v920
        %1031 = vmatprep.subr.bf16.mxu0 0
        %1032 = vmatpush1.bf16.msra.mxu0 %v921
        %1033 = vmatprep.subr.bf16.mxu0 0
        %1034 = vmatpush1.bf16.msra.mxu0 %v922
        %1035 = vmatprep.subr.bf16.mxu0 0
        %1036 = vmatpush1.bf16.msra.mxu0 %v923
        %1037 = vmatprep.subr.bf16.mxu0 0
        %1038 = vmatpush1.bf16.msra.mxu0 %v924
        %1039 = vmatprep.subr.bf16.mxu0 0
        %1040 = vmatpush1.bf16.msra.mxu0 %v925
        %1041 = vmatprep.subr.bf16.mxu0 0
        %1042 = vmatpush1.bf16.msra.mxu0 %v926
        %1043 = vmatprep.subr.bf16.mxu0 0
        %1044 = vmatpush1.bf16.msra.mxu0 %v927
        %1045 = vmatprep.subr.bf16.mxu0 0
        %1046 = vmatpush1.bf16.msra.mxu0 %v928
        %1047 = vmatprep.mubr.bf16.mxu0 %v705
        %1048 = vmatmul.mubr.bf16.gmra.mrb[0].mxu0 %v704
        %v1049 = vpop.f32.mrb[0].mxu0
        %v1050 = vadd.f32 %v680, %v1049
        %v1051 = vpop.f32.mrb[0].mxu0
        %v1052 = vpop.f32.mrb[0].mxu0
        %v1053 = vadd.f32 %v680, %v1052
        %v1054 = vpop.f32.mrb[0].mxu0
        %1055 = vdwg.mxu0
        %1056 = vmatprep.subr.bf16.mxu0 0
        %1057 = vmatpush1.bf16.msra.mxu0 %v929
        %1058 = vmatprep.subr.bf16.mxu0 0
        %1059 = vmatpush1.bf16.msra.mxu0 %v930
        %1060 = vmatprep.subr.bf16.mxu0 0
        %1061 = vmatpush1.bf16.msra.mxu0 %v931
        %1062 = vmatprep.subr.bf16.mxu0 0
        %1063 = vmatpush1.bf16.msra.mxu0 %v932
        %1064 = vmatprep.subr.bf16.mxu0 0
        %1065 = vmatpush1.bf16.msra.mxu0 %v933
        %1066 = vmatprep.subr.bf16.mxu0 0
        %1067 = vmatpush1.bf16.msra.mxu0 %v934
        %1068 = vmatprep.subr.bf16.mxu0 0
        %1069 = vmatpush1.bf16.msra.mxu0 %v935
        %1070 = vmatprep.subr.bf16.mxu0 0
        %1071 = vmatpush1.bf16.msra.mxu0 %v936
        %1072 = vmatprep.subr.bf16.mxu0 0
        %1073 = vmatpush1.bf16.msra.mxu0 %v937
        %1074 = vmatprep.subr.bf16.mxu0 0
        %1075 = vmatpush1.bf16.msra.mxu0 %v938
        %1076 = vmatprep.subr.bf16.mxu0 0
        %1077 = vmatpush1.bf16.msra.mxu0 %v939
        %1078 = vmatprep.subr.bf16.mxu0 0
        %1079 = vmatpush1.bf16.msra.mxu0 %v940
        %1080 = vmatprep.subr.bf16.mxu0 0
        %1081 = vmatpush1.bf16.msra.mxu0 %v941
        %1082 = vmatprep.subr.bf16.mxu0 0
        %1083 = vmatpush1.bf16.msra.mxu0 %v942
        %1084 = vmatprep.subr.bf16.mxu0 0
        %1085 = vmatpush1.bf16.msra.mxu0 %v943
        %1086 = vmatprep.subr.bf16.mxu0 0
        %1087 = vmatpush1.bf16.msra.mxu0 %v944
        %1088 = vmatprep.mubr.bf16.mxu0 %v707
        %1089 = vmatmul.mubr.bf16.gmra.mrb[0].mxu0 %v706
        %v1090 = vpop.f32.mrb[0].mxu0
        %v1091 = vadd.f32 %v1050, %v1090
        %v1092 = vpop.f32.mrb[0].mxu0
        %v1093 = vpop.f32.mrb[0].mxu0
        %v1094 = vadd.f32 %v1053, %v1093
        %v1095 = vpop.f32.mrb[0].mxu0
        %1096 = vdwg.mxu0
        %1097 = vmatprep.subr.bf16.mxu0 0
        %1098 = vmatpush1.bf16.msra.mxu0 %v945
        %1099 = vmatprep.subr.bf16.mxu0 0
        %1100 = vmatpush1.bf16.msra.mxu0 %v946
        %1101 = vmatprep.subr.bf16.mxu0 0
        %1102 = vmatpush1.bf16.msra.mxu0 %v947
        %1103 = vmatprep.subr.bf16.mxu0 0
        %1104 = vmatpush1.bf16.msra.mxu0 %v948
        %1105 = vmatprep.subr.bf16.mxu0 0
        %1106 = vmatpush1.bf16.msra.mxu0 %v949
        %1107 = vmatprep.subr.bf16.mxu0 0
        %1108 = vmatpush1.bf16.msra.mxu0 %v950
        %1109 = vmatprep.subr.bf16.mxu0 0
        %1110 = vmatpush1.bf16.msra.mxu0 %v951
        %1111 = vmatprep.subr.bf16.mxu0 0
        %1112 = vmatpush1.bf16.msra.mxu0 %v952
        %1113 = vmatprep.subr.bf16.mxu0 0
        %1114 = vmatpush1.bf16.msra.mxu0 %v953
        %1115 = vmatprep.subr.bf16.mxu0 0
        %1116 = vmatpush1.bf16.msra.mxu0 %v954
        %1117 = vmatprep.subr.bf16.mxu0 0
        %1118 = vmatpush1.bf16.msra.mxu0 %v955
        %1119 = vmatprep.subr.bf16.mxu0 0
        %1120 = vmatpush1.bf16.msra.mxu0 %v956
        %1121 = vmatprep.subr.bf16.mxu0 0
        %1122 = vmatpush1.bf16.msra.mxu0 %v957
        %1123 = vmatprep.subr.bf16.mxu0 0
        %1124 = vmatpush1.bf16.msra.mxu0 %v958
        %1125 = vmatprep.subr.bf16.mxu0 0
        %1126 = vmatpush1.bf16.msra.mxu0 %v959
        %1127 = vmatprep.subr.bf16.mxu0 0
        %1128 = vmatpush1.bf16.msra.mxu0 %v960
        %1129 = vmatprep.mubr.bf16.mxu0 %v709
        %1130 = vmatmul.mubr.bf16.gmra.mrb[0].mxu0 %v708
        %v1131 = vpop.f32.mrb[0].mxu0
        %v1132 = vadd.f32 %v1091, %v1131
        %v1133 = vpop.f32.mrb[0].mxu0
        %v1134 = vpop.f32.mrb[0].mxu0
        %v1135 = vadd.f32 %v1094, %v1134
        %v1136 = vpop.f32.mrb[0].mxu0
        %1137 = vdwg.mxu0
        %1138 = vmatprep.subr.bf16.mxu0 0
        %1139 = vmatpush1.bf16.msra.mxu0 %v961
        %1140 = vmatprep.subr.bf16.mxu0 0
        %1141 = vmatpush1.bf16.msra.mxu0 0
        %1142 = vmatprep.subr.bf16.mxu0 0
        %1143 = vmatpush1.bf16.msra.mxu0 0
        %1144 = vmatprep.subr.bf16.mxu0 0
        %1145 = vmatpush1.bf16.msra.mxu0 0
        %1146 = vmatprep.subr.bf16.mxu0 0
        %1147 = vmatpush1.bf16.msra.mxu0 0
        %1148 = vmatprep.subr.bf16.mxu0 0
        %1149 = vmatpush1.bf16.msra.mxu0 0
        %1150 = vmatprep.subr.bf16.mxu0 0
        %1151 = vmatpush1.bf16.msra.mxu0 0
        %1152 = vmatprep.subr.bf16.mxu0 0
        %1153 = vmatpush1.bf16.msra.mxu0 0
        %1154 = vmatprep.subr.bf16.mxu0 0
        %1155 = vmatpush1.bf16.msra.mxu0 0
        %1156 = vmatprep.subr.bf16.mxu0 0
        %1157 = vmatpush1.bf16.msra.mxu0 0
        %1158 = vmatprep.subr.bf16.mxu0 0
        %1159 = vmatpush1.bf16.msra.mxu0 0
        %1160 = vmatprep.subr.bf16.mxu0 0
        %1161 = vmatpush1.bf16.msra.mxu0 0
        %1162 = vmatprep.subr.bf16.mxu0 0
        %1163 = vmatpush1.bf16.msra.mxu0 0
        %1164 = vmatprep.subr.bf16.mxu0 0
        %1165 = vmatpush1.bf16.msra.mxu0 0
        %1166 = vmatprep.subr.bf16.mxu0 0
        %1167 = vmatpush1.bf16.msra.mxu0 0
        %1168 = vmatprep.subr.bf16.mxu0 0
        %1169 = vmatpush1.bf16.msra.mxu0 0
        %1170 = vmatprep.mubr.bf16.mxu0 0
        %1171 = vmatmul.mubr.bf16.gmra.mrb[0].mxu0 %v1013
        %v1172 = vpop.f32.mrb[0].mxu0
        %v1173 = vadd.f32 %v1132, %v1172
        %v1174 = vpop.f32.mrb[0].mxu0
        %v1175 = vpop.f32.mrb[0].mxu0
        %v1176 = vadd.f32 %v1135, %v1175
        %v1177 = vpop.f32.mrb[0].mxu0
        %1178 = vdwg.mxu0
        %v1179 = vmax.f32 %v1173, 0.0
        %v1180 = vmax.f32 %v1176, 0.0
        %v1181 = vpack.c.bf16 %v1180, %v1179
        %v1182 = vld [vmem:[%s3] sm:$0xf]
        %v1183 = vld [vmem:[%s3 + $0x4] sm:$0xf]
        %v1184 = vld [vmem:[%s3 + $0x8] sm:$0xf]
        %v1185 = vld [vmem:[%s3 + $0xc] sm:$0xf]
        %v1186 = vld [vmem:[%s3 + $0x10] sm:$0xf]
        %v1187 = vld [vmem:[%s3 + $0x14] sm:$0xf]
        %v1188 = vld [vmem:[%s3 + $0x18] sm:$0xf]
        %v1189 = vld [vmem:[%s3 + $0x1c] sm:$0xf]
        %v1190 = vld [vmem:[%s3 + $0x20] sm:$0xf]
        %v1191 = vld [vmem:[%s3 + $0x24] sm:$0xf]
        %v1192 = vld [vmem:[%s3 + $0x28] sm:$0xf]
        %v1193 = vld [vmem:[%s3 + $0x2c] sm:$0xf]
        %v1194 = vld [vmem:[%s3 + $0x30] sm:$0xf]
        %v1195 = vld [vmem:[%s3 + $0x34] sm:$0xf]
        %v1196 = vld [vmem:[%s3 + $0x38] sm:$0xf]
        %v1197 = vld [vmem:[%s3 + $0x3c] sm:$0xf]
        %v1198 = vld [vmem:[%s4] sm:$0x1]
        %v1200 = vlaneseq
        %v1201 = vshrl.u32 %v1200, 7
        %v1202 = vsub.s32 0, %v1201
        %v1203 = vrot.slane %v1198, %v1202
        %v1221 = vunpack.c.l.b16 %v1182
        %v1222 = vunpack.c.l.b16 %v1183
        %v1223 = vunpack.c.l.b16 %v1184
        %v1224 = vunpack.c.l.b16 %v1185
        %v1225 = vunpack.c.l.b16 %v1186
        %v1226 = vunpack.c.l.b16 %v1187
        %v1227 = vunpack.c.l.b16 %v1188
        %v1228 = vunpack.c.l.b16 %v1189
        %v1229 = vunpack.c.l.b16 %v1190
        %v1230 = vunpack.c.l.b16 %v1191
        %v1231 = vunpack.c.l.b16 %v1192
        %v1232 = vunpack.c.l.b16 %v1193
        %v1233 = vunpack.c.l.b16 %v1194
        %v1234 = vunpack.c.l.b16 %v1195
        %v1235 = vunpack.c.l.b16 %v1196
        %v1236 = vunpack.c.l.b16 %v1197
        %v1237 = vpack.c.b16 %v1222, %v1221
        %v1238 = vpack.c.b16 %v1224, %v1223
        %v1239 = vpack.c.b16 %v1226, %v1225
        %v1240 = vpack.c.b16 %v1228, %v1227
        %v1241 = vpack.c.b16 %v1230, %v1229
        %v1242 = vpack.c.b16 %v1232, %v1231
        %v1243 = vpack.c.b16 %v1234, %v1233
        %v1244 = vpack.c.b16 %v1236, %v1235
        %1253 = vmatprep.subr.bf16.mxu0 0
        %1254 = vmatpush1.bf16.msra.mxu0 %v1237
        %1255 = vmatprep.subr.bf16.mxu0 0
        %1256 = vmatpush1.bf16.msra.mxu0 %v1238
        %1257 = vmatprep.subr.bf16.mxu0 0
        %1258 = vmatpush1.bf16.msra.mxu0 %v1239
        %1259 = vmatprep.subr.bf16.mxu0 0
        %1260 = vmatpush1.bf16.msra.mxu0 %v1240
        %1261 = vmatprep.subr.bf16.mxu0 0
        %1262 = vmatpush1.bf16.msra.mxu0 %v1241
        %1263 = vmatprep.subr.bf16.mxu0 0
        %1264 = vmatpush1.bf16.msra.mxu0 %v1242
        %1265 = vmatprep.subr.bf16.mxu0 0
        %1266 = vmatpush1.bf16.msra.mxu0 %v1243
        %1267 = vmatprep.subr.bf16.mxu0 0
        %1268 = vmatpush1.bf16.msra.mxu0 %v1244
        %1269 = vmatprep.subr.bf16.mxu0 0
        %1270 = vmatpush1.bf16.msra.mxu0 0
        %1271 = vmatprep.subr.bf16.mxu0 0
        %1272 = vmatpush1.bf16.msra.mxu0 0
        %1273 = vmatprep.subr.bf16.mxu0 0
        %1274 = vmatpush1.bf16.msra.mxu0 0
        %1275 = vmatprep.subr.bf16.mxu0 0
        %1276 = vmatpush1.bf16.msra.mxu0 0
        %1277 = vmatprep.subr.bf16.mxu0 0
        %1278 = vmatpush1.bf16.msra.mxu0 0
        %1279 = vmatprep.subr.bf16.mxu0 0
        %1280 = vmatpush1.bf16.msra.mxu0 0
        %1281 = vmatprep.subr.bf16.mxu0 0
        %1282 = vmatpush1.bf16.msra.mxu0 0
        %1283 = vmatprep.subr.bf16.mxu0 0
        %1284 = vmatpush1.bf16.msra.mxu0 0
        %1285 = vmatprep.mubr.bf16.mxu0 0
        %1286 = vmatmul.mubr.bf16.gmra.mrb[0].mxu0 %v1181
        %v1287 = vpop.f32.mrb[0].mxu0
        %v1288 = vadd.f32 %v1203, %v1287
        %v1289 = vpop.f32.mrb[0].mxu0
        %v1290 = vpop.f32.mrb[0].mxu0
        %v1291 = vadd.f32 %v1203, %v1290
        %v1292 = vpop.f32.mrb[0].mxu0
        %1293 = vdwg.mxu0
        %v1294 = vmax.f32 %v1288, 0.0
        %v1295 = vmax.f32 %v1291, 0.0
        %v1296 = vpack.c.bf16 %v1295, %v1294
        %v1297 = vld [vmem:[%s5] sm:$0xf]
        %v1298 = vld [vmem:[%s5 + $0x4] sm:$0xf]
        %v1299 = vld [vmem:[%s5 + $0x8] sm:$0xf]
        %v1300 = vld [vmem:[%s5 + $0xc] sm:$0xf]
        %v1301 = vld [vmem:[%s5 + $0x10] sm:$0xf]
        %v1302 = vld [vmem:[%s5 + $0x14] sm:$0xf]
        %v1303 = vld [vmem:[%s5 + $0x18] sm:$0xf]
        %v1304 = vld [vmem:[%s5 + $0x1c] sm:$0xf]
        %v1305 = vld [vmem:[%s5 + $0x20] sm:$0xf]
        %v1306 = vld [vmem:[%s5 + $0x24] sm:$0xf]
        %v1307 = vld [vmem:[%s5 + $0x28] sm:$0xf]
        %v1308 = vld [vmem:[%s5 + $0x2c] sm:$0xf]
        %v1309 = vld [vmem:[%s5 + $0x30] sm:$0xf]
        %v1310 = vld [vmem:[%s5 + $0x34] sm:$0xf]
        %v1311 = vld [vmem:[%s5 + $0x38] sm:$0xf]
        %v1312 = vld [vmem:[%s5 + $0x3c] sm:$0xf]
        %v1313 = vld [vmem:[%s6] sm:$0x1]
        %v1315 = vlaneseq
        %v1316 = vshrl.u32 %v1315, 7
        %v1317 = vsub.s32 0, %v1316
        %v1318 = vrot.slane %v1313, %v1317
        %v1336 = vunpack.c.l.b16 %v1297
        %v1337 = vunpack.c.l.b16 %v1298
        %v1338 = vunpack.c.l.b16 %v1299
        %v1339 = vunpack.c.l.b16 %v1300
        %v1340 = vunpack.c.l.b16 %v1301
        %v1341 = vunpack.c.l.b16 %v1302
        %v1342 = vunpack.c.l.b16 %v1303
        %v1343 = vunpack.c.l.b16 %v1304
        %v1344 = vunpack.c.l.b16 %v1305
        %v1345 = vunpack.c.l.b16 %v1306
        %v1346 = vunpack.c.l.b16 %v1307
        %v1347 = vunpack.c.l.b16 %v1308
        %v1348 = vunpack.c.l.b16 %v1309
        %v1349 = vunpack.c.l.b16 %v1310
        %v1350 = vunpack.c.l.b16 %v1311
        %v1351 = vunpack.c.l.b16 %v1312
        %v1352 = vpack.c.b16 %v1337, %v1336
        %v1353 = vpack.c.b16 %v1339, %v1338
        %v1354 = vpack.c.b16 %v1341, %v1340
        %v1355 = vpack.c.b16 %v1343, %v1342
        %v1356 = vpack.c.b16 %v1345, %v1344
        %v1357 = vpack.c.b16 %v1347, %v1346
        %v1358 = vpack.c.b16 %v1349, %v1348
        %v1359 = vpack.c.b16 %v1351, %v1350
        %1368 = vmatprep.subr.bf16.mxu0 0
        %1369 = vmatpush1.bf16.msra.mxu0 %v1352
        %1370 = vmatprep.subr.bf16.mxu0 0
        %1371 = vmatpush1.bf16.msra.mxu0 %v1353
        %1372 = vmatprep.subr.bf16.mxu0 0
        %1373 = vmatpush1.bf16.msra.mxu0 %v1354
        %1374 = vmatprep.subr.bf16.mxu0 0
        %1375 = vmatpush1.bf16.msra.mxu0 %v1355
        %1376 = vmatprep.subr.bf16.mxu0 0
        %1377 = vmatpush1.bf16.msra.mxu0 %v1356
        %1378 = vmatprep.subr.bf16.mxu0 0
        %1379 = vmatpush1.bf16.msra.mxu0 %v1357
        %1380 = vmatprep.subr.bf16.mxu0 0
        %1381 = vmatpush1.bf16.msra.mxu0 %v1358
        %1382 = vmatprep.subr.bf16.mxu0 0
        %1383 = vmatpush1.bf16.msra.mxu0 %v1359
        %1384 = vmatprep.subr.bf16.mxu0 0
        %1385 = vmatpush1.bf16.msra.mxu0 0
        %1386 = vmatprep.subr.bf16.mxu0 0
        %1387 = vmatpush1.bf16.msra.mxu0 0
        %1388 = vmatprep.subr.bf16.mxu0 0
        %1389 = vmatpush1.bf16.msra.mxu0 0
        %1390 = vmatprep.subr.bf16.mxu0 0
        %1391 = vmatpush1.bf16.msra.mxu0 0
        %1392 = vmatprep.subr.bf16.mxu0 0
        %1393 = vmatpush1.bf16.msra.mxu0 0
        %1394 = vmatprep.subr.bf16.mxu0 0
        %1395 = vmatpush1.bf16.msra.mxu0 0
        %1396 = vmatprep.subr.bf16.mxu0 0
        %1397 = vmatpush1.bf16.msra.mxu0 0
        %1398 = vmatprep.subr.bf16.mxu0 0
        %1399 = vmatpush1.bf16.msra.mxu0 0
        %1400 = vmatprep.mubr.bf16.mxu0 0
        %1401 = vmatmul.mubr.bf16.gmra.mrb[0].mxu0 %v1296
        %v1402 = vpop.f32.mrb[0].mxu0
        %v1403 = vadd.f32 %v1318, %v1402
        %v1404 = vpop.f32.mrb[0].mxu0
        %v1405 = vpop.f32.mrb[0].mxu0
        %v1406 = vadd.f32 %v1318, %v1405
        %v1407 = vpop.f32.mrb[0].mxu0
        %1408 = vdwg.mxu0
        %v1409 = vmax.f32 %v1403, 0.0
        %v1410 = vmax.f32 %v1406, 0.0
        %v1411 = vpack.c.bf16 %v1410, %v1409
        %v1412 = vld [vmem:[%s7] sm:$0xf]
        %v1413 = vld [vmem:[%s7 + $0x4] sm:$0xf]
        %v1414 = vld [vmem:[%s7 + $0x8] sm:$0xf]
        %v1415 = vld [vmem:[%s7 + $0xc] sm:$0xf]
        %v1416 = vld [vmem:[%s7 + $0x10] sm:$0xf]
        %v1417 = vld [vmem:[%s7 + $0x14] sm:$0xf]
        %v1418 = vld [vmem:[%s7 + $0x18] sm:$0xf]
        %v1419 = vld [vmem:[%s7 + $0x1c] sm:$0xf]
        %v1420 = vld [vmem:[%s7 + $0x20] sm:$0xf]
        %v1421 = vld [vmem:[%s7 + $0x24] sm:$0xf]
        %v1422 = vld [vmem:[%s7 + $0x28] sm:$0xf]
        %v1423 = vld [vmem:[%s7 + $0x2c] sm:$0xf]
        %v1424 = vld [vmem:[%s7 + $0x30] sm:$0xf]
        %v1425 = vld [vmem:[%s7 + $0x34] sm:$0xf]
        %v1426 = vld [vmem:[%s7 + $0x38] sm:$0xf]
        %v1427 = vld [vmem:[%s7 + $0x3c] sm:$0xf]
        %v1428 = vld [vmem:[%s8] sm:$0x1]
        %v1430 = vlaneseq
        %v1431 = vshrl.u32 %v1430, 7
        %v1432 = vsub.s32 0, %v1431
        %v1433 = vrot.slane %v1428, %v1432
        %v1451 = vunpack.c.l.b16 %v1412
        %v1452 = vunpack.c.l.b16 %v1413
        %v1453 = vunpack.c.l.b16 %v1414
        %v1454 = vunpack.c.l.b16 %v1415
        %v1455 = vunpack.c.l.b16 %v1416
        %v1456 = vunpack.c.l.b16 %v1417
        %v1457 = vunpack.c.l.b16 %v1418
        %v1458 = vunpack.c.l.b16 %v1419
        %v1459 = vunpack.c.l.b16 %v1420
        %v1460 = vunpack.c.l.b16 %v1421
        %v1461 = vunpack.c.l.b16 %v1422
        %v1462 = vunpack.c.l.b16 %v1423
        %v1463 = vunpack.c.l.b16 %v1424
        %v1464 = vunpack.c.l.b16 %v1425
        %v1465 = vunpack.c.l.b16 %v1426
        %v1466 = vunpack.c.l.b16 %v1427
        %v1467 = vpack.c.b16 %v1452, %v1451
        %v1468 = vpack.c.b16 %v1454, %v1453
        %v1469 = vpack.c.b16 %v1456, %v1455
        %v1470 = vpack.c.b16 %v1458, %v1457
        %v1471 = vpack.c.b16 %v1460, %v1459
        %v1472 = vpack.c.b16 %v1462, %v1461
        %v1473 = vpack.c.b16 %v1464, %v1463
        %v1474 = vpack.c.b16 %v1466, %v1465
        %1483 = vmatprep.subr.bf16.mxu0 0
        %1484 = vmatpush1.bf16.msra.mxu0 %v1467
        %1485 = vmatprep.subr.bf16.mxu0 0
        %1486 = vmatpush1.bf16.msra.mxu0 %v1468
        %1487 = vmatprep.subr.bf16.mxu0 0
        %1488 = vmatpush1.bf16.msra.mxu0 %v1469
        %1489 = vmatprep.subr.bf16.mxu0 0
        %1490 = vmatpush1.bf16.msra.mxu0 %v1470
        %1491 = vmatprep.subr.bf16.mxu0 0
        %1492 = vmatpush1.bf16.msra.mxu0 %v1471
        %1493 = vmatprep.subr.bf16.mxu0 0
        %1494 = vmatpush1.bf16.msra.mxu0 %v1472
        %1495 = vmatprep.subr.bf16.mxu0 0
        %1496 = vmatpush1.bf16.msra.mxu0 %v1473
        %1497 = vmatprep.subr.bf16.mxu0 0
        %1498 = vmatpush1.bf16.msra.mxu0 %v1474
        %1499 = vmatprep.subr.bf16.mxu0 0
        %1500 = vmatpush1.bf16.msra.mxu0 0
        %1501 = vmatprep.subr.bf16.mxu0 0
        %1502 = vmatpush1.bf16.msra.mxu0 0
        %1503 = vmatprep.subr.bf16.mxu0 0
        %1504 = vmatpush1.bf16.msra.mxu0 0
        %1505 = vmatprep.subr.bf16.mxu0 0
        %1506 = vmatpush1.bf16.msra.mxu0 0
        %1507 = vmatprep.subr.bf16.mxu0 0
        %1508 = vmatpush1.bf16.msra.mxu0 0
        %1509 = vmatprep.subr.bf16.mxu0 0
        %1510 = vmatpush1.bf16.msra.mxu0 0
        %1511 = vmatprep.subr.bf16.mxu0 0
        %1512 = vmatpush1.bf16.msra.mxu0 0
        %1513 = vmatprep.subr.bf16.mxu0 0
        %1514 = vmatpush1.bf16.msra.mxu0 0
        %1515 = vmatprep.mubr.bf16.mxu0 0
        %1516 = vmatmul.mubr.bf16.gmra.mrb[0].mxu0 %v1411
        %v1517 = vpop.f32.mrb[0].mxu0
        %v1518 = vadd.f32 %v1433, %v1517
        %v1519 = vpop.f32.mrb[0].mxu0
        %v1520 = vpop.f32.mrb[0].mxu0
        %v1521 = vadd.f32 %v1433, %v1520
        %v1522 = vpop.f32.mrb[0].mxu0
        %1523 = vdwg.mxu0
        %v1524 = vpack.c.bf16 %v1521, %v1518
        %v1525 = vld [vmem:[%s9] sm:$0xf]
        %v1526 = vld [vmem:[%s9 + $0x4] sm:$0xf]
        %v1527 = vld [vmem:[%s9 + $0x8] sm:$0xf]
        %v1528 = vld [vmem:[%s9 + $0xc] sm:$0xf]
        %v1529 = vld [vmem:[%s9 + $0x10] sm:$0xf]
        %v1530 = vld [vmem:[%s9 + $0x14] sm:$0xf]
        %v1531 = vld [vmem:[%s9 + $0x18] sm:$0xf]
        %v1532 = vld [vmem:[%s9 + $0x1c] sm:$0xf]
        %v1533 = vld [vmem:[%s9 + $0x20] sm:$0xf]
        %v1534 = vld [vmem:[%s9 + $0x24] sm:$0xf]
        %v1535 = vld [vmem:[%s9 + $0x28] sm:$0xf]
        %v1536 = vld [vmem:[%s9 + $0x2c] sm:$0xf]
        %v1537 = vld [vmem:[%s9 + $0x30] sm:$0xf]
        %v1538 = vld [vmem:[%s9 + $0x34] sm:$0xf]
        %v1539 = vld [vmem:[%s9 + $0x38] sm:$0xf]
        %v1540 = vld [vmem:[%s9 + $0x3c] sm:$0xf]
        %v1541 = vld [vmem:[%s10] sm:$0x1]
        %v1543 = vlaneseq
        %v1544 = vshrl.u32 %v1543, 7
        %v1545 = vsub.s32 0, %v1544
        %v1546 = vrot.slane %v1541, %v1545
        %v1564 = vunpack.c.l.b16 %v1525
        %v1565 = vunpack.c.l.b16 %v1526
        %v1566 = vunpack.c.l.b16 %v1527
        %v1567 = vunpack.c.l.b16 %v1528
        %v1568 = vunpack.c.l.b16 %v1529
        %v1569 = vunpack.c.l.b16 %v1530
        %v1570 = vunpack.c.l.b16 %v1531
        %v1571 = vunpack.c.l.b16 %v1532
        %v1572 = vunpack.c.l.b16 %v1533
        %v1573 = vunpack.c.l.b16 %v1534
        %v1574 = vunpack.c.l.b16 %v1535
        %v1575 = vunpack.c.l.b16 %v1536
        %v1576 = vunpack.c.l.b16 %v1537
        %v1577 = vunpack.c.l.b16 %v1538
        %v1578 = vunpack.c.l.b16 %v1539
        %v1579 = vunpack.c.l.b16 %v1540
        %v1580 = vpack.c.b16 %v1565, %v1564
        %v1581 = vpack.c.b16 %v1567, %v1566
        %v1582 = vpack.c.b16 %v1569, %v1568
        %v1583 = vpack.c.b16 %v1571, %v1570
        %v1584 = vpack.c.b16 %v1573, %v1572
        %v1585 = vpack.c.b16 %v1575, %v1574
        %v1586 = vpack.c.b16 %v1577, %v1576
        %v1587 = vpack.c.b16 %v1579, %v1578
        %1596 = vmatprep.subr.bf16.mxu0 0
        %1597 = vmatpush1.bf16.msra.mxu0 %v1580
        %1598 = vmatprep.subr.bf16.mxu0 0
        %1599 = vmatpush1.bf16.msra.mxu0 %v1581
        %1600 = vmatprep.subr.bf16.mxu0 0
        %1601 = vmatpush1.bf16.msra.mxu0 %v1582
        %1602 = vmatprep.subr.bf16.mxu0 0
        %1603 = vmatpush1.bf16.msra.mxu0 %v1583
        %1604 = vmatprep.subr.bf16.mxu0 0
        %1605 = vmatpush1.bf16.msra.mxu0 %v1584
        %1606 = vmatprep.subr.bf16.mxu0 0
        %1607 = vmatpush1.bf16.msra.mxu0 %v1585
        %1608 = vmatprep.subr.bf16.mxu0 0
        %1609 = vmatpush1.bf16.msra.mxu0 %v1586
        %1610 = vmatprep.subr.bf16.mxu0 0
        %1611 = vmatpush1.bf16.msra.mxu0 %v1587
        %1612 = vmatprep.subr.bf16.mxu0 0
        %1613 = vmatpush1.bf16.msra.mxu0 0
        %1614 = vmatprep.subr.bf16.mxu0 0
        %1615 = vmatpush1.bf16.msra.mxu0 0
        %1616 = vmatprep.subr.bf16.mxu0 0
        %1617 = vmatpush1.bf16.msra.mxu0 0
        %1618 = vmatprep.subr.bf16.mxu0 0
        %1619 = vmatpush1.bf16.msra.mxu0 0
        %1620 = vmatprep.subr.bf16.mxu0 0
        %1621 = vmatpush1.bf16.msra.mxu0 0
        %1622 = vmatprep.subr.bf16.mxu0 0
        %1623 = vmatpush1.bf16.msra.mxu0 0
        %1624 = vmatprep.subr.bf16.mxu0 0
        %1625 = vmatpush1.bf16.msra.mxu0 0
        %1626 = vmatprep.subr.bf16.mxu0 0
        %1627 = vmatpush1.bf16.msra.mxu0 0
        %1628 = vmatprep.mubr.bf16.mxu0 0
        %1629 = vmatmul.mubr.bf16.gmra.mrb[0].mxu0 %v1524
        %v1630 = vpop.f32.mrb[0].mxu0
        %v1631 = vadd.f32 %v1546, %v1630
        %v1632 = vpop.f32.mrb[0].mxu0
        %v1633 = vpop.f32.mrb[0].mxu0
        %v1634 = vadd.f32 %v1546, %v1633
        %v1635 = vpop.f32.mrb[0].mxu0
        %1636 = vdwg.mxu0
        %v1637 = vmax.f32 %v1631, 0.0
        %v1638 = vmax.f32 %v1634, 0.0
        %v1639 = vpack.c.bf16 %v1638, %v1637
        %v1640 = vld [vmem:[%s11] sm:$0xf]
        %v1641 = vld [vmem:[%s11 + $0x4] sm:$0xf]
        %v1642 = vld [vmem:[%s11 + $0x8] sm:$0xf]
        %v1643 = vld [vmem:[%s11 + $0xc] sm:$0xf]
        %v1644 = vld [vmem:[%s11 + $0x10] sm:$0xf]
        %v1645 = vld [vmem:[%s11 + $0x14] sm:$0xf]
        %v1646 = vld [vmem:[%s11 + $0x18] sm:$0xf]
        %v1647 = vld [vmem:[%s11 + $0x1c] sm:$0xf]
        %v1648 = vld [vmem:[%s11 + $0x20] sm:$0xf]
        %v1649 = vld [vmem:[%s11 + $0x24] sm:$0xf]
        %v1650 = vld [vmem:[%s11 + $0x28] sm:$0xf]
        %v1651 = vld [vmem:[%s11 + $0x2c] sm:$0xf]
        %v1652 = vld [vmem:[%s11 + $0x30] sm:$0xf]
        %v1653 = vld [vmem:[%s11 + $0x34] sm:$0xf]
        %v1654 = vld [vmem:[%s11 + $0x38] sm:$0xf]
        %v1655 = vld [vmem:[%s11 + $0x3c] sm:$0xf]
        %v1656 = vld [vmem:[%s12] sm:$0x1]
        %v1658 = vlaneseq
        %v1659 = vshrl.u32 %v1658, 7
        %v1660 = vsub.s32 0, %v1659
        %v1661 = vrot.slane %v1656, %v1660
        %v1679 = vunpack.c.l.b16 %v1640
        %v1680 = vunpack.c.l.b16 %v1641
        %v1681 = vunpack.c.l.b16 %v1642
        %v1682 = vunpack.c.l.b16 %v1643
        %v1683 = vunpack.c.l.b16 %v1644
        %v1684 = vunpack.c.l.b16 %v1645
        %v1685 = vunpack.c.l.b16 %v1646
        %v1686 = vunpack.c.l.b16 %v1647
        %v1687 = vunpack.c.l.b16 %v1648
        %v1688 = vunpack.c.l.b16 %v1649
        %v1689 = vunpack.c.l.b16 %v1650
        %v1690 = vunpack.c.l.b16 %v1651
        %v1691 = vunpack.c.l.b16 %v1652
        %v1692 = vunpack.c.l.b16 %v1653
        %v1693 = vunpack.c.l.b16 %v1654
        %v1694 = vunpack.c.l.b16 %v1655
        %v1695 = vpack.c.b16 %v1680, %v1679
        %v1696 = vpack.c.b16 %v1682, %v1681
        %v1697 = vpack.c.b16 %v1684, %v1683
        %v1698 = vpack.c.b16 %v1686, %v1685
        %v1699 = vpack.c.b16 %v1688, %v1687
        %v1700 = vpack.c.b16 %v1690, %v1689
        %v1701 = vpack.c.b16 %v1692, %v1691
        %v1702 = vpack.c.b16 %v1694, %v1693
        %1711 = vmatprep.subr.bf16.mxu0 0
        %1712 = vmatpush1.bf16.msra.mxu0 %v1695
        %1713 = vmatprep.subr.bf16.mxu0 0
        %1714 = vmatpush1.bf16.msra.mxu0 %v1696
        %1715 = vmatprep.subr.bf16.mxu0 0
        %1716 = vmatpush1.bf16.msra.mxu0 %v1697
        %1717 = vmatprep.subr.bf16.mxu0 0
        %1718 = vmatpush1.bf16.msra.mxu0 %v1698
        %1719 = vmatprep.subr.bf16.mxu0 0
        %1720 = vmatpush1.bf16.msra.mxu0 %v1699
        %1721 = vmatprep.subr.bf16.mxu0 0
        %1722 = vmatpush1.bf16.msra.mxu0 %v1700
        %1723 = vmatprep.subr.bf16.mxu0 0
        %1724 = vmatpush1.bf16.msra.mxu0 %v1701
        %1725 = vmatprep.subr.bf16.mxu0 0
        %1726 = vmatpush1.bf16.msra.mxu0 %v1702
        %1727 = vmatprep.subr.bf16.mxu0 0
        %1728 = vmatpush1.bf16.msra.mxu0 0
        %1729 = vmatprep.subr.bf16.mxu0 0
        %1730 = vmatpush1.bf16.msra.mxu0 0
        %1731 = vmatprep.subr.bf16.mxu0 0
        %1732 = vmatpush1.bf16.msra.mxu0 0
        %1733 = vmatprep.subr.bf16.mxu0 0
        %1734 = vmatpush1.bf16.msra.mxu0 0
        %1735 = vmatprep.subr.bf16.mxu0 0
        %1736 = vmatpush1.bf16.msra.mxu0 0
        %1737 = vmatprep.subr.bf16.mxu0 0
        %1738 = vmatpush1.bf16.msra.mxu0 0
        %1739 = vmatprep.subr.bf16.mxu0 0
        %1740 = vmatpush1.bf16.msra.mxu0 0
        %1741 = vmatprep.subr.bf16.mxu0 0
        %1742 = vmatpush1.bf16.msra.mxu0 0
        %1743 = vmatprep.mubr.bf16.mxu0 0
        %1744 = vmatmul.mubr.bf16.gmra.mrb[0].mxu0 %v1639
        %v1745 = vpop.f32.mrb[0].mxu0
        %v1746 = vadd.f32 %v1661, %v1745
        %v1747 = vpop.f32.mrb[0].mxu0
        %v1748 = vpop.f32.mrb[0].mxu0
        %v1749 = vadd.f32 %v1661, %v1748
        %v1750 = vpop.f32.mrb[0].mxu0
        %1751 = vdwg.mxu0
        %v1752 = vmax.f32 %v1746, 0.0
        %v1753 = vmax.f32 %v1749, 0.0
        %v1754 = vpack.c.bf16 %v1753, %v1752
        %v1755 = vld [vmem:[#allocation2] sm:$0xf]
        %v1756 = vld [vmem:[#allocation2 + $0x4] sm:$0xf]
        %v1757 = vld [vmem:[#allocation2 + $0x8] sm:$0xf]
        %v1758 = vld [vmem:[#allocation2 + $0xc] sm:$0xf]
        %v1759 = vld [vmem:[#allocation2 + $0x10] sm:$0xf]
        %v1760 = vld [vmem:[#allocation2 + $0x14] sm:$0xf]
        %v1761 = vld [vmem:[#allocation2 + $0x18] sm:$0xf]
        %v1762 = vld [vmem:[#allocation2 + $0x1c] sm:$0xf]
        %v1763 = vld [vmem:[#allocation2 + $0x20] sm:$0xf]
        %v1764 = vld [vmem:[#allocation2 + $0x24] sm:$0xf]
        %v1765 = vld [vmem:[#allocation2 + $0x28] sm:$0xf]
        %v1766 = vld [vmem:[#allocation2 + $0x2c] sm:$0xf]
        %v1767 = vld [vmem:[#allocation2 + $0x30] sm:$0xf]
        %v1768 = vld [vmem:[#allocation2 + $0x34] sm:$0xf]
        %v1769 = vld [vmem:[#allocation2 + $0x38] sm:$0xf]
        %v1770 = vld [vmem:[#allocation2 + $0x3c] sm:$0xf]
        %v1771 = vld [vmem:[%s14] sm:$0x1]
        %v1773 = vlaneseq
        %v1774 = vshrl.u32 %v1773, 7
        %v1775 = vsub.s32 0, %v1774
        %v1776 = vrot.slane %v1771, %v1775
        %v1794 = vunpack.c.l.b16 %v1755
        %v1795 = vunpack.c.l.b16 %v1756
        %v1796 = vunpack.c.l.b16 %v1757
        %v1797 = vunpack.c.l.b16 %v1758
        %v1798 = vunpack.c.l.b16 %v1759
        %v1799 = vunpack.c.l.b16 %v1760
        %v1800 = vunpack.c.l.b16 %v1761
        %v1801 = vunpack.c.l.b16 %v1762
        %v1802 = vunpack.c.l.b16 %v1763
        %v1803 = vunpack.c.l.b16 %v1764
        %v1804 = vunpack.c.l.b16 %v1765
        %v1805 = vunpack.c.l.b16 %v1766
        %v1806 = vunpack.c.l.b16 %v1767
        %v1807 = vunpack.c.l.b16 %v1768
        %v1808 = vunpack.c.l.b16 %v1769
        %v1809 = vunpack.c.l.b16 %v1770
        %v1810 = vpack.c.b16 %v1795, %v1794
        %v1811 = vpack.c.b16 %v1797, %v1796
        %v1812 = vpack.c.b16 %v1799, %v1798
        %v1813 = vpack.c.b16 %v1801, %v1800
        %v1814 = vpack.c.b16 %v1803, %v1802
        %v1815 = vpack.c.b16 %v1805, %v1804
        %v1816 = vpack.c.b16 %v1807, %v1806
        %v1817 = vpack.c.b16 %v1809, %v1808
        %1826 = vmatprep.subr.bf16.mxu0 0
        %1827 = vmatpush1.bf16.msra.mxu0 %v1810
        %1828 = vmatprep.subr.bf16.mxu0 0
        %1829 = vmatpush1.bf16.msra.mxu0 %v1811
        %1830 = vmatprep.subr.bf16.mxu0 0
        %1831 = vmatpush1.bf16.msra.mxu0 %v1812
        %1832 = vmatprep.subr.bf16.mxu0 0
        %1833 = vmatpush1.bf16.msra.mxu0 %v1813
        %1834 = vmatprep.subr.bf16.mxu0 0
        %1835 = vmatpush1.bf16.msra.mxu0 %v1814
        %1836 = vmatprep.subr.bf16.mxu0 0
        %1837 = vmatpush1.bf16.msra.mxu0 %v1815
        %1838 = vmatprep.subr.bf16.mxu0 0
        %1839 = vmatpush1.bf16.msra.mxu0 %v1816
        %1840 = vmatprep.subr.bf16.mxu0 0
        %1841 = vmatpush1.bf16.msra.mxu0 %v1817
        %1842 = vmatprep.subr.bf16.mxu0 0
        %1843 = vmatpush1.bf16.msra.mxu0 0
        %1844 = vmatprep.subr.bf16.mxu0 0
        %1845 = vmatpush1.bf16.msra.mxu0 0
        %1846 = vmatprep.subr.bf16.mxu0 0
        %1847 = vmatpush1.bf16.msra.mxu0 0
        %1848 = vmatprep.subr.bf16.mxu0 0
        %1849 = vmatpush1.bf16.msra.mxu0 0
        %1850 = vmatprep.subr.bf16.mxu0 0
        %1851 = vmatpush1.bf16.msra.mxu0 0
        %1852 = vmatprep.subr.bf16.mxu0 0
        %1853 = vmatpush1.bf16.msra.mxu0 0
        %1854 = vmatprep.subr.bf16.mxu0 0
        %1855 = vmatpush1.bf16.msra.mxu0 0
        %1856 = vmatprep.subr.bf16.mxu0 0
        %1857 = vmatpush1.bf16.msra.mxu0 0
        %1858 = vmatprep.mubr.bf16.mxu0 0
        %1859 = vmatmul.mubr.bf16.gmra.mrb[0].mxu0 %v1754
        %v1860 = vpop.f32.mrb[0].mxu0
        %v1861 = vadd.f32 %v1776, %v1860
        %v1862 = vpop.f32.mrb[0].mxu0
        %v1863 = vpop.f32.mrb[0].mxu0
        %v1864 = vadd.f32 %v1776, %v1863
        %v1865 = vpop.f32.mrb[0].mxu0
        %1866 = vdwg.mxu0
        %v1867 = vmax.f32 %v1861, 0.0
        %v1868 = vmax.f32 %v1864, 0.0
        %v1869 = vpack.c.bf16 %v1868, %v1867
        %v1870 = vld [vmem:[%s15] sm:$0xff]
        %v1871 = vld [vmem:[%s15 + $0x8] sm:$0xff]
        %v1872 = vld [vmem:[%s15 + $0x10] sm:$0xff]
        %v1873 = vld [vmem:[%s15 + $0x18] sm:$0xf]
        %v1874 = vld [vmem:[%s15 + $0x1c] sm:$0xff]
        %v1875 = vld [vmem:[%s15 + $0x24] sm:$0xff]
        %v1876 = vld [vmem:[%s15 + $0x2c] sm:$0xff]
        %v1877 = vld [vmem:[%s15 + $0x34] sm:$0xf]
        %v1878 = vld [vmem:[%s15 + $0x38] sm:$0xff]
        %v1879 = vld [vmem:[%s15 + $0x40] sm:$0xff]
        %v1880 = vld [vmem:[%s15 + $0x48] sm:$0xff]
        %v1881 = vld [vmem:[%s15 + $0x50] sm:$0xf]
        %v1882 = vld [vmem:[%s15 + $0x54] sm:$0xff]
        %v1883 = vld [vmem:[%s15 + $0x5c] sm:$0xff]
        %v1884 = vld [vmem:[%s15 + $0x64] sm:$0xff]
        %v1885 = vld [vmem:[%s15 + $0x6c] sm:$0xf]
        %v1886 = vld [vmem:[%s15 + $0x70] sm:$0xff]
        %v1887 = vld [vmem:[%s15 + $0x78] sm:$0xff]
        %v1888 = vld [vmem:[%s15 + $0x80] sm:$0xff]
        %v1889 = vld [vmem:[%s15 + $0x88] sm:$0xf]
        %v1890 = vld [vmem:[%s15 + $0x8c] sm:$0xff]
        %v1891 = vld [vmem:[%s15 + $0x94] sm:$0xff]
        %v1892 = vld [vmem:[%s15 + $0x9c] sm:$0xff]
        %v1893 = vld [vmem:[%s15 + $0xa4] sm:$0xf]
        %v1894 = vld [vmem:[%s15 + $0xa8] sm:$0xff]
        %v1895 = vld [vmem:[%s15 + $0xb0] sm:$0xff]
        %v1896 = vld [vmem:[%s15 + $0xb8] sm:$0xff]
        %v1897 = vld [vmem:[%s15 + $0xc0] sm:$0xf]
        %v1898 = vld [vmem:[%s15 + $0xc4] sm:$0xff]
        %v1899 = vld [vmem:[%s15 + $0xcc] sm:$0xff]
        %v1900 = vld [vmem:[%s15 + $0xd4] sm:$0xff]
        %v1901 = vld [vmem:[%s15 + $0xdc] sm:$0xf]
        %v1902 = vld [vmem:[%s15 + $0xe0] sm:$0xff]
        %v1903 = vld [vmem:[%s15 + $0xe8] sm:$0xff]
        %v1904 = vld [vmem:[%s15 + $0xf0] sm:$0xff]
        %v1905 = vld [vmem:[%s15 + $0xf8] sm:$0xf]
        %v1906 = vld [vmem:[%s15 + $0xfc] sm:$0xff]
        %v1907 = vld [vmem:[%s15 + $0x104] sm:$0xff]
        %v1908 = vld [vmem:[%s15 + $0x10c] sm:$0xff]
        %v1909 = vld [vmem:[%s15 + $0x114] sm:$0xf]
        %v1910 = vld [vmem:[%s15 + $0x118] sm:$0xff]
        %v1911 = vld [vmem:[%s15 + $0x120] sm:$0xff]
        %v1912 = vld [vmem:[%s15 + $0x128] sm:$0xff]
        %v1913 = vld [vmem:[%s15 + $0x130] sm:$0xf]
        %v1914 = vld [vmem:[%s15 + $0x134] sm:$0xff]
        %v1915 = vld [vmem:[%s15 + $0x13c] sm:$0xff]
        %v1916 = vld [vmem:[%s15 + $0x144] sm:$0xff]
        %v1917 = vld [vmem:[%s15 + $0x14c] sm:$0xf]
        %v1918 = vld [vmem:[%s15 + $0x150] sm:$0xff]
        %v1919 = vld [vmem:[%s15 + $0x158] sm:$0xff]
        %v1920 = vld [vmem:[%s15 + $0x160] sm:$0xff]
        %v1921 = vld [vmem:[%s15 + $0x168] sm:$0xf]
        %v1922 = vld [vmem:[%s15 + $0x16c] sm:$0xff]
        %v1923 = vld [vmem:[%s15 + $0x174] sm:$0xff]
        %v1924 = vld [vmem:[%s15 + $0x17c] sm:$0xff]
        %v1925 = vld [vmem:[%s15 + $0x184] sm:$0xf]
        %v1926 = vld [vmem:[%s15 + $0x188] sm:$0xff]
        %v1927 = vld [vmem:[%s15 + $0x190] sm:$0xff]
        %v1928 = vld [vmem:[%s15 + $0x198] sm:$0xff]
        %v1929 = vld [vmem:[%s15 + $0x1a0] sm:$0xf]
        %v1930 = vld [vmem:[%s15 + $0x1a4] sm:$0xff]
        %v1931 = vld [vmem:[%s15 + $0x1ac] sm:$0xff]
        %v1932 = vld [vmem:[%s15 + $0x1b4] sm:$0xff]
        %v1933 = vld [vmem:[%s15 + $0x1bc] sm:$0xf]
        %v1934 = vld [vmem:[%s16] sm:$0x7f]
        %v1936 = vlaneseq
        %v1937 = vshrl.u32 %v1936, 7
        %v1938 = vsub.s32 0, %v1937
        %v1939 = vrot.slane %v1934, %v1938
        %v1940 = vlaneseq
        %v1941 = vshrl.u32 %v1940, 7
        %v1942 = vsub.s32 1, %v1941
        %v1943 = vrot.slane %v1934, %v1942
        %v1944 = vlaneseq
        %v1945 = vshrl.u32 %v1944, 7
        %v1946 = vsub.s32 2, %v1945
        %v1947 = vrot.slane %v1934, %v1946
        %v1948 = vlaneseq
        %v1949 = vshrl.u32 %v1948, 7
        %v1950 = vsub.s32 3, %v1949
        %v1951 = vrot.slane %v1934, %v1950
        %v1952 = vlaneseq
        %v1953 = vshrl.u32 %v1952, 7
        %v1954 = vsub.s32 4, %v1953
        %v1955 = vrot.slane %v1934, %v1954
        %v1956 = vlaneseq
        %v1957 = vshrl.u32 %v1956, 7
        %v1958 = vsub.s32 5, %v1957
        %v1959 = vrot.slane %v1934, %v1958
        %v1960 = vlaneseq
        %v1961 = vshrl.u32 %v1960, 7
        %v1962 = vsub.s32 6, %v1961
        %v1963 = vrot.slane %v1934, %v1962
        %v2035 = vunpack.c.l.b16 %v1870
        %v2036 = vunpack.c.h.b16 %v1870
        %v2037 = vunpack.c.l.b16 %v1871
        %v2038 = vunpack.c.h.b16 %v1871
        %v2039 = vunpack.c.l.b16 %v1872
        %v2040 = vunpack.c.h.b16 %v1872
        %v2041 = vunpack.c.l.b16 %v1873
        %v2042 = vunpack.c.l.b16 %v1874
        %v2043 = vunpack.c.h.b16 %v1874
        %v2044 = vunpack.c.l.b16 %v1875
        %v2045 = vunpack.c.h.b16 %v1875
        %v2046 = vunpack.c.l.b16 %v1876
        %v2047 = vunpack.c.h.b16 %v1876
        %v2048 = vunpack.c.l.b16 %v1877
        %v2049 = vunpack.c.l.b16 %v1878
        %v2050 = vunpack.c.h.b16 %v1878
        %v2051 = vunpack.c.l.b16 %v1879
        %v2052 = vunpack.c.h.b16 %v1879
        %v2053 = vunpack.c.l.b16 %v1880
        %v2054 = vunpack.c.h.b16 %v1880
        %v2055 = vunpack.c.l.b16 %v1881
        %v2056 = vunpack.c.l.b16 %v1882
        %v2057 = vunpack.c.h.b16 %v1882
        %v2058 = vunpack.c.l.b16 %v1883
        %v2059 = vunpack.c.h.b16 %v1883
        %v2060 = vunpack.c.l.b16 %v1884
        %v2061 = vunpack.c.h.b16 %v1884
        %v2062 = vunpack.c.l.b16 %v1885
        %v2063 = vunpack.c.l.b16 %v1886
        %v2064 = vunpack.c.h.b16 %v1886
        %v2065 = vunpack.c.l.b16 %v1887
        %v2066 = vunpack.c.h.b16 %v1887
        %v2067 = vunpack.c.l.b16 %v1888
        %v2068 = vunpack.c.h.b16 %v1888
        %v2069 = vunpack.c.l.b16 %v1889
        %v2070 = vunpack.c.l.b16 %v1890
        %v2071 = vunpack.c.h.b16 %v1890
        %v2072 = vunpack.c.l.b16 %v1891
        %v2073 = vunpack.c.h.b16 %v1891
        %v2074 = vunpack.c.l.b16 %v1892
        %v2075 = vunpack.c.h.b16 %v1892
        %v2076 = vunpack.c.l.b16 %v1893
        %v2077 = vunpack.c.l.b16 %v1894
        %v2078 = vunpack.c.h.b16 %v1894
        %v2079 = vunpack.c.l.b16 %v1895
        %v2080 = vunpack.c.h.b16 %v1895
        %v2081 = vunpack.c.l.b16 %v1896
        %v2082 = vunpack.c.h.b16 %v1896
        %v2083 = vunpack.c.l.b16 %v1897
        %v2084 = vunpack.c.l.b16 %v1898
        %v2085 = vunpack.c.h.b16 %v1898
        %v2086 = vunpack.c.l.b16 %v1899
        %v2087 = vunpack.c.h.b16 %v1899
        %v2088 = vunpack.c.l.b16 %v1900
        %v2089 = vunpack.c.h.b16 %v1900
        %v2090 = vunpack.c.l.b16 %v1901
        %v2091 = vunpack.c.l.b16 %v1902
        %v2092 = vunpack.c.h.b16 %v1902
        %v2093 = vunpack.c.l.b16 %v1903
        %v2094 = vunpack.c.h.b16 %v1903
        %v2095 = vunpack.c.l.b16 %v1904
        %v2096 = vunpack.c.h.b16 %v1904
        %v2097 = vunpack.c.l.b16 %v1905
        %v2098 = vunpack.c.l.b16 %v1906
        %v2099 = vunpack.c.h.b16 %v1906
        %v2100 = vunpack.c.l.b16 %v1907
        %v2101 = vunpack.c.h.b16 %v1907
        %v2102 = vunpack.c.l.b16 %v1908
        %v2103 = vunpack.c.h.b16 %v1908
        %v2104 = vunpack.c.l.b16 %v1909
        %v2105 = vunpack.c.l.b16 %v1910
        %v2106 = vunpack.c.h.b16 %v1910
        %v2107 = vunpack.c.l.b16 %v1911
        %v2108 = vunpack.c.h.b16 %v1911
        %v2109 = vunpack.c.l.b16 %v1912
        %v2110 = vunpack.c.h.b16 %v1912
        %v2111 = vunpack.c.l.b16 %v1913
        %v2112 = vunpack.c.l.b16 %v1914
        %v2113 = vunpack.c.h.b16 %v1914
        %v2114 = vunpack.c.l.b16 %v1915
        %v2115 = vunpack.c.h.b16 %v1915
        %v2116 = vunpack.c.l.b16 %v1916
        %v2117 = vunpack.c.h.b16 %v1916
        %v2118 = vunpack.c.l.b16 %v1917
        %v2119 = vunpack.c.l.b16 %v1918
        %v2120 = vunpack.c.h.b16 %v1918
        %v2121 = vunpack.c.l.b16 %v1919
        %v2122 = vunpack.c.h.b16 %v1919
        %v2123 = vunpack.c.l.b16 %v1920
        %v2124 = vunpack.c.h.b16 %v1920
        %v2125 = vunpack.c.l.b16 %v1921
        %v2126 = vunpack.c.l.b16 %v1922
        %v2127 = vunpack.c.h.b16 %v1922
        %v2128 = vunpack.c.l.b16 %v1923
        %v2129 = vunpack.c.h.b16 %v1923
        %v2130 = vunpack.c.l.b16 %v1924
        %v2131 = vunpack.c.h.b16 %v1924
        %v2132 = vunpack.c.l.b16 %v1925
        %v2133 = vunpack.c.l.b16 %v1926
        %v2134 = vunpack.c.h.b16 %v1926
        %v2135 = vunpack.c.l.b16 %v1927
        %v2136 = vunpack.c.h.b16 %v1927
        %v2137 = vunpack.c.l.b16 %v1928
        %v2138 = vunpack.c.h.b16 %v1928
        %v2139 = vunpack.c.l.b16 %v1929
        %v2140 = vunpack.c.l.b16 %v1930
        %v2141 = vunpack.c.h.b16 %v1930
        %v2142 = vunpack.c.l.b16 %v1931
        %v2143 = vunpack.c.h.b16 %v1931
        %v2144 = vunpack.c.l.b16 %v1932
        %v2145 = vunpack.c.h.b16 %v1932
        %v2146 = vunpack.c.l.b16 %v1933
        %v2147 = vpack.c.b16 %v2042, %v2035
        %v2148 = vpack.c.b16 %v2043, %v2036
        %v2149 = vpack.c.b16 %v2044, %v2037
        %v2150 = vpack.c.b16 %v2045, %v2038
        %v2151 = vpack.c.b16 %v2046, %v2039
        %v2152 = vpack.c.b16 %v2047, %v2040
        %v2153 = vpack.c.b16 %v2048, %v2041
        %v2154 = vpack.c.b16 %v2056, %v2049
        %v2155 = vpack.c.b16 %v2057, %v2050
        %v2156 = vpack.c.b16 %v2058, %v2051
        %v2157 = vpack.c.b16 %v2059, %v2052
        %v2158 = vpack.c.b16 %v2060, %v2053
        %v2159 = vpack.c.b16 %v2061, %v2054
        %v2160 = vpack.c.b16 %v2062, %v2055
        %v2161 = vpack.c.b16 %v2070, %v2063
        %v2162 = vpack.c.b16 %v2071, %v2064
        %v2163 = vpack.c.b16 %v2072, %v2065
        %v2164 = vpack.c.b16 %v2073, %v2066
        %v2165 = vpack.c.b16 %v2074, %v2067
        %v2166 = vpack.c.b16 %v2075, %v2068
        %v2167 = vpack.c.b16 %v2076, %v2069
        %v2168 = vpack.c.b16 %v2084, %v2077
        %v2169 = vpack.c.b16 %v2085, %v2078
        %v2170 = vpack.c.b16 %v2086, %v2079
        %v2171 = vpack.c.b16 %v2087, %v2080
        %v2172 = vpack.c.b16 %v2088, %v2081
        %v2173 = vpack.c.b16 %v2089, %v2082
        %v2174 = vpack.c.b16 %v2090, %v2083
        %v2175 = vpack.c.b16 %v2098, %v2091
        %v2176 = vpack.c.b16 %v2099, %v2092
        %v2177 = vpack.c.b16 %v2100, %v2093
        %v2178 = vpack.c.b16 %v2101, %v2094
        %v2179 = vpack.c.b16 %v2102, %v2095
        %v2180 = vpack.c.b16 %v2103, %v2096
        %v2181 = vpack.c.b16 %v2104, %v2097
        %v2182 = vpack.c.b16 %v2112, %v2105
        %v2183 = vpack.c.b16 %v2113, %v2106
        %v2184 = vpack.c.b16 %v2114, %v2107
        %v2185 = vpack.c.b16 %v2115, %v2108
        %v2186 = vpack.c.b16 %v2116, %v2109
        %v2187 = vpack.c.b16 %v2117, %v2110
        %v2188 = vpack.c.b16 %v2118, %v2111
        %v2189 = vpack.c.b16 %v2126, %v2119
        %v2190 = vpack.c.b16 %v2127, %v2120
        %v2191 = vpack.c.b16 %v2128, %v2121
        %v2192 = vpack.c.b16 %v2129, %v2122
        %v2193 = vpack.c.b16 %v2130, %v2123
        %v2194 = vpack.c.b16 %v2131, %v2124
        %v2195 = vpack.c.b16 %v2132, %v2125
        %v2196 = vpack.c.b16 %v2140, %v2133
        %v2197 = vpack.c.b16 %v2141, %v2134
        %v2198 = vpack.c.b16 %v2142, %v2135
        %v2199 = vpack.c.b16 %v2143, %v2136
        %v2200 = vpack.c.b16 %v2144, %v2137
        %v2201 = vpack.c.b16 %v2145, %v2138
        %v2202 = vpack.c.b16 %v2146, %v2139
        %2259 = vmatprep.subr.bf16.mxu0 %v2148
        %2260 = vmatpush1.bf16.msra.mxu0 %v2147
        %2261 = vmatprep.subr.bf16.mxu0 %v2155
        %2262 = vmatpush1.bf16.msra.mxu0 %v2154
        %2263 = vmatprep.subr.bf16.mxu0 %v2162
        %2264 = vmatpush1.bf16.msra.mxu0 %v2161
        %2265 = vmatprep.subr.bf16.mxu0 %v2169
        %2266 = vmatpush1.bf16.msra.mxu0 %v2168
        %2267 = vmatprep.subr.bf16.mxu0 %v2176
        %2268 = vmatpush1.bf16.msra.mxu0 %v2175
        %2269 = vmatprep.subr.bf16.mxu0 %v2183
        %2270 = vmatpush1.bf16.msra.mxu0 %v2182
        %2271 = vmatprep.subr.bf16.mxu0 %v2190
        %2272 = vmatpush1.bf16.msra.mxu0 %v2189
        %2273 = vmatprep.subr.bf16.mxu0 %v2197
        %2274 = vmatpush1.bf16.msra.mxu0 %v2196
        %2275 = vmatprep.subr.bf16.mxu0 0
        %2276 = vmatpush1.bf16.msra.mxu0 0
        %2277 = vmatprep.subr.bf16.mxu0 0
        %2278 = vmatpush1.bf16.msra.mxu0 0
        %2279 = vmatprep.subr.bf16.mxu0 0
        %2280 = vmatpush1.bf16.msra.mxu0 0
        %2281 = vmatprep.subr.bf16.mxu0 0
        %2282 = vmatpush1.bf16.msra.mxu0 0
        %2283 = vmatprep.subr.bf16.mxu0 0
        %2284 = vmatpush1.bf16.msra.mxu0 0
        %2285 = vmatprep.subr.bf16.mxu0 0
        %2286 = vmatpush1.bf16.msra.mxu0 0
        %2287 = vmatprep.subr.bf16.mxu0 0
        %2288 = vmatpush1.bf16.msra.mxu0 0
        %2289 = vmatprep.subr.bf16.mxu0 0
        %2290 = vmatpush1.bf16.msra.mxu0 0
        %2291 = vmatprep.mubr.bf16.mxu0 0
        %2292 = vmatmul.mubr.bf16.gmra.mrb[0].mxu0 %v1869
        %v2293 = vpop.f32.mrb[0].mxu0
        %v2294 = vadd.f32 %v1939, %v2293
        %v2295 = vpop.f32.mrb[0].mxu0
        %v2296 = vadd.f32 %v1943, %v2295
        %v2297 = vpop.f32.mrb[0].mxu0
        %v2298 = vadd.f32 %v1939, %v2297
        %v2299 = vpop.f32.mrb[0].mxu0
        %v2300 = vadd.f32 %v1943, %v2299
        %2301 = vdwg.mxu0
        %2302 = vmatprep.subr.bf16.mxu0 %v2150
        %2303 = vmatpush1.bf16.msra.mxu0 %v2149
        %2304 = vmatprep.subr.bf16.mxu0 %v2157
        %2305 = vmatpush1.bf16.msra.mxu0 %v2156
        %2306 = vmatprep.subr.bf16.mxu0 %v2164
        %2307 = vmatpush1.bf16.msra.mxu0 %v2163
        %2308 = vmatprep.subr.bf16.mxu0 %v2171
        %2309 = vmatpush1.bf16.msra.mxu0 %v2170
        %2310 = vmatprep.subr.bf16.mxu0 %v2178
        %2311 = vmatpush1.bf16.msra.mxu0 %v2177
        %2312 = vmatprep.subr.bf16.mxu0 %v2185
        %2313 = vmatpush1.bf16.msra.mxu0 %v2184
        %2314 = vmatprep.subr.bf16.mxu0 %v2192
        %2315 = vmatpush1.bf16.msra.mxu0 %v2191
        %2316 = vmatprep.subr.bf16.mxu0 %v2199
        %2317 = vmatpush1.bf16.msra.mxu0 %v2198
        %2318 = vmatprep.subr.bf16.mxu0 0
        %2319 = vmatpush1.bf16.msra.mxu0 0
        %2320 = vmatprep.subr.bf16.mxu0 0
        %2321 = vmatpush1.bf16.msra.mxu0 0
        %2322 = vmatprep.subr.bf16.mxu0 0
        %2323 = vmatpush1.bf16.msra.mxu0 0
        %2324 = vmatprep.subr.bf16.mxu0 0
        %2325 = vmatpush1.bf16.msra.mxu0 0
        %2326 = vmatprep.subr.bf16.mxu0 0
        %2327 = vmatpush1.bf16.msra.mxu0 0
        %2328 = vmatprep.subr.bf16.mxu0 0
        %2329 = vmatpush1.bf16.msra.mxu0 0
        %2330 = vmatprep.subr.bf16.mxu0 0
        %2331 = vmatpush1.bf16.msra.mxu0 0
        %2332 = vmatprep.subr.bf16.mxu0 0
        %2333 = vmatpush1.bf16.msra.mxu0 0
        %2334 = vmatprep.mubr.bf16.mxu0 0
        %2335 = vmatmul.mubr.bf16.gmra.mrb[0].mxu0 %v1869
        %v2336 = vpop.f32.mrb[0].mxu0
        %v2337 = vadd.f32 %v1947, %v2336
        %v2338 = vpop.f32.mrb[0].mxu0
        %v2339 = vadd.f32 %v1951, %v2338
        %v2340 = vpop.f32.mrb[0].mxu0
        %v2341 = vadd.f32 %v1947, %v2340
        %v2342 = vpop.f32.mrb[0].mxu0
        %v2343 = vadd.f32 %v1951, %v2342
        %2344 = vdwg.mxu0
        %2345 = vmatprep.subr.bf16.mxu0 %v2152
        %2346 = vmatpush1.bf16.msra.mxu0 %v2151
        %2347 = vmatprep.subr.bf16.mxu0 %v2159
        %2348 = vmatpush1.bf16.msra.mxu0 %v2158
        %2349 = vmatprep.subr.bf16.mxu0 %v2166
        %2350 = vmatpush1.bf16.msra.mxu0 %v2165
        %2351 = vmatprep.subr.bf16.mxu0 %v2173
        %2352 = vmatpush1.bf16.msra.mxu0 %v2172
        %2353 = vmatprep.subr.bf16.mxu0 %v2180
        %2354 = vmatpush1.bf16.msra.mxu0 %v2179
        %2355 = vmatprep.subr.bf16.mxu0 %v2187
        %2356 = vmatpush1.bf16.msra.mxu0 %v2186
        %2357 = vmatprep.subr.bf16.mxu0 %v2194
        %2358 = vmatpush1.bf16.msra.mxu0 %v2193
        %2359 = vmatprep.subr.bf16.mxu0 %v2201
        %2360 = vmatpush1.bf16.msra.mxu0 %v2200
        %2361 = vmatprep.subr.bf16.mxu0 0
        %2362 = vmatpush1.bf16.msra.mxu0 0
        %2363 = vmatprep.subr.bf16.mxu0 0
        %2364 = vmatpush1.bf16.msra.mxu0 0
        %2365 = vmatprep.subr.bf16.mxu0 0
        %2366 = vmatpush1.bf16.msra.mxu0 0
        %2367 = vmatprep.subr.bf16.mxu0 0
        %2368 = vmatpush1.bf16.msra.mxu0 0
        %2369 = vmatprep.subr.bf16.mxu0 0
        %2370 = vmatpush1.bf16.msra.mxu0 0
        %2371 = vmatprep.subr.bf16.mxu0 0
        %2372 = vmatpush1.bf16.msra.mxu0 0
        %2373 = vmatprep.subr.bf16.mxu0 0
        %2374 = vmatpush1.bf16.msra.mxu0 0
        %2375 = vmatprep.subr.bf16.mxu0 0
        %2376 = vmatpush1.bf16.msra.mxu0 0
        %2377 = vmatprep.mubr.bf16.mxu0 0
        %2378 = vmatmul.mubr.bf16.gmra.mrb[0].mxu0 %v1869
        %v2379 = vpop.f32.mrb[0].mxu0
        %v2380 = vadd.f32 %v1955, %v2379
        %v2381 = vpop.f32.mrb[0].mxu0
        %v2382 = vadd.f32 %v1959, %v2381
        %v2383 = vpop.f32.mrb[0].mxu0
        %v2384 = vadd.f32 %v1955, %v2383
        %v2385 = vpop.f32.mrb[0].mxu0
        %v2386 = vadd.f32 %v1959, %v2385
        %2387 = vdwg.mxu0
        %2388 = vmatprep.subr.bf16.mxu0 0
        %2389 = vmatpush1.bf16.msra.mxu0 %v2153
        %2390 = vmatprep.subr.bf16.mxu0 0
        %2391 = vmatpush1.bf16.msra.mxu0 %v2160
        %2392 = vmatprep.subr.bf16.mxu0 0
        %2393 = vmatpush1.bf16.msra.mxu0 %v2167
        %2394 = vmatprep.subr.bf16.mxu0 0
        %2395 = vmatpush1.bf16.msra.mxu0 %v2174
        %2396 = vmatprep.subr.bf16.mxu0 0
        %2397 = vmatpush1.bf16.msra.mxu0 %v2181
        %2398 = vmatprep.subr.bf16.mxu0 0
        %2399 = vmatpush1.bf16.msra.mxu0 %v2188
        %2400 = vmatprep.subr.bf16.mxu0 0
        %2401 = vmatpush1.bf16.msra.mxu0 %v2195
        %2402 = vmatprep.subr.bf16.mxu0 0
        %2403 = vmatpush1.bf16.msra.mxu0 %v2202
        %2404 = vmatprep.subr.bf16.mxu0 0
        %2405 = vmatpush1.bf16.msra.mxu0 0
        %2406 = vmatprep.subr.bf16.mxu0 0
        %2407 = vmatpush1.bf16.msra.mxu0 0
        %2408 = vmatprep.subr.bf16.mxu0 0
        %2409 = vmatpush1.bf16.msra.mxu0 0
        %2410 = vmatprep.subr.bf16.mxu0 0
        %2411 = vmatpush1.bf16.msra.mxu0 0
        %2412 = vmatprep.subr.bf16.mxu0 0
        %2413 = vmatpush1.bf16.msra.mxu0 0
        %2414 = vmatprep.subr.bf16.mxu0 0
        %2415 = vmatpush1.bf16.msra.mxu0 0
        %2416 = vmatprep.subr.bf16.mxu0 0
        %2417 = vmatpush1.bf16.msra.mxu0 0
        %2418 = vmatprep.subr.bf16.mxu0 0
        %2419 = vmatpush1.bf16.msra.mxu0 0
        %2420 = vmatprep.mubr.bf16.mxu0 0
        %2421 = vmatmul.mubr.bf16.gmra.mrb[0].mxu0 %v1869
        %v2422 = vpop.f32.mrb[0].mxu0
        %v2423 = vadd.f32 %v1963, %v2422
        %v2424 = vpop.f32.mrb[0].mxu0
        %v2425 = vpop.f32.mrb[0].mxu0
        %v2426 = vadd.f32 %v1963, %v2425
        %v2427 = vpop.f32.mrb[0].mxu0
        %2428 = vdwg.mxu0
        %v2429 = vtanh.pop %v2294
        %v2430 = vtanh.pop %v2296
        %v2431 = vtanh.pop %v2337
        %v2432 = vtanh.pop %v2339
        %v2433 = vtanh.pop %v2380
        %v2434 = vtanh.pop %v2382
        %v2435 = vtanh.pop %v2423
        %v2436 = vtanh.pop %v2298
        %v2437 = vtanh.pop %v2300
        %v2438 = vtanh.pop %v2341
        %v2439 = vtanh.pop %v2343
        %v2440 = vtanh.pop %v2384
        %v2441 = vtanh.pop %v2386
        %v2442 = vtanh.pop %v2426
        %v2443 = vpack.c.bf16 %v2436, %v2429
        %v2444 = vpack.c.bf16 %v2437, %v2430
        %v2445 = vpack.c.bf16 %v2438, %v2431
        %v2446 = vpack.c.bf16 %v2439, %v2432
        %v2447 = vpack.c.bf16 %v2440, %v2433
        %v2448 = vpack.c.bf16 %v2441, %v2434
        %v2449 = vpack.c.bf16 %v2442, %v2435
        %v2457 = vunpack.c.l.b16 %v2443
        %v2458 = vunpack.c.l.b16 %v2444
        %v2459 = vunpack.c.l.b16 %v2445
        %v2460 = vunpack.c.l.b16 %v2446
        %v2461 = vunpack.c.l.b16 %v2447
        %v2462 = vunpack.c.l.b16 %v2448
        %v2463 = vunpack.c.l.b16 %v2449
        %v2464 = vunpack.c.h.b16 %v2443
        %v2465 = vunpack.c.h.b16 %v2444
        %v2466 = vunpack.c.h.b16 %v2445
        %v2467 = vunpack.c.h.b16 %v2446
        %v2468 = vunpack.c.h.b16 %v2447
        %v2469 = vunpack.c.h.b16 %v2448
        %v2470 = vunpack.c.h.b16 %v2449
        %v2471 = vpack.c.b16 %v2458, %v2457
        %v2472 = vpack.c.b16 %v2460, %v2459
        %v2473 = vpack.c.b16 %v2462, %v2461
        %v2474 = vpack.c.b16 %v2463, %v2463
        %v2475 = vpack.c.b16 %v2465, %v2464
        %v2476 = vpack.c.b16 %v2467, %v2466
        %v2477 = vpack.c.b16 %v2469, %v2468
        %v2478 = vpack.c.b16 %v2470, %v2470
        %2487 = vst [vmem:[%s559] sm:$0xff] %v2471
        %2488 = vst [vmem:[%s559 + $0x8] sm:$0xff] %v2472
        %2489 = vst [vmem:[%s559 + $0x10] sm:$0xff] %v2473
        %vm2490 = vcmask 125952
        %2491 = vst.msk [vmem:[%s559 + $0x18] sm:$0xf] %vm2490, %v2474
        %2492 = vst [vmem:[%s559 + $0x1c] sm:$0xff] %v2475
        %2493 = vst [vmem:[%s559 + $0x24] sm:$0xff] %v2476
        %2494 = vst [vmem:[%s559 + $0x2c] sm:$0xff] %v2477
        %2495 = vst.msk [vmem:[%s559 + $0x34] sm:$0xf] %vm2490, %v2478
        %s2496 = sand.u32 %s402, 1
        %s2497 = scalar_lea.sflag [#allocation4], %s2496
        %s2498 = sand.u32 %s402, 1
        %s2499 = smul.addr %s2498, 56
        %s2500 = scalar_lea.vmem [#allocation5], %s2499
        // Predicated region
        $region93: #{_autoencoder_pallas.1} parent=87 // pred_check
          %p2501 = pneg %p412
        $region94: #{_autoencoder_pallas.1} parent=87 // pred_check_branch
          %2503 = sbr.rel (%p2501) target = $region96
        $region95: #{_autoencoder_pallas.1} parent=87 // pred_region
          %s2504 = smul.u32 2, %s32
          %s2506 = ssub.s32 896, 896
          %2507 = vsyncadd %s2497, %s2506
          %s2508 = smul.addr %s2504, 7
          %s2509 = smul.addr %s2508, 64
          %s2510 = scalar_lea.hbm %s17, %s2509
          %s2511 = sshll.u32 %s2500, 4
          %s2512 = int_to_ptr.vmem [resolvable:$true] %s2511
          %2517 = dma.vmem_to_hbm [thread:$0]  %s2512, 896, %s2510, %s2497, 448, 448, 28
        $region96: #{_autoencoder_pallas.1} parent=87 // pred_fallthru
          _
      $region88: #{_autoencoder_pallas.1} parent=5 // pred_fallthru
        _
      %p2518 = scmp.le.s32.totalorder 2, %s27
      // Predicated region
      $region97: #{_autoencoder_pallas.1} parent=5 // pred_check
        %p2519 = pneg %p2518
      $region98: #{_autoencoder_pallas.1} parent=5 // pred_check_branch
        %2521 = sbr.rel (%p2519) target = $region100
      $region99: #{_autoencoder_pallas.1} parent=5 // pred_region
        %s2522 = ssub.s32 %s27, 2
        // Predicated region
        $region101: #{_autoencoder_pallas.1} parent=99 // pred_check
          %p2523 = pneg %p418
        $region102: #{_autoencoder_pallas.1} parent=99 // pred_check_branch
          %2525 = sbr.rel (%p2523) target = $region104
        $region103: #{_autoencoder_pallas.1} parent=99 // pred_region
          %s2526 = sand.u32 %s403, 1
          %s2527 = scalar_lea.sflag [#allocation4], %s2526
          %s2528 = sand.u32 %s403, 1
          %s2529 = smul.addr %s2528, 56
          %s2530 = scalar_lea.vmem [#allocation5], %s2529
          %2531 = dma.done %s2527, 896
        $region104: #{_autoencoder_pallas.1} parent=99 // pred_fallthru
          _
      $region100: #{_autoencoder_pallas.1} parent=5 // pred_fallthru
        _
    $region6: #{_autoencoder_pallas.1} parent=1 // loop_footer
      %s31 = sadd.s32 1, %s27
    $region7: #{_autoencoder_pallas.1} parent=1 // loop_footer_branch
      %26 = sbr.rel target = $region3
    $region8: #{_autoencoder_pallas.1} parent=1 // loop_exit
      _
    %2532 = vsyncpa [#allocation3], 1
    %s2533 = scalar_lea.sflag [#allocation3], 1
    %2534 = vsyncpa %s2533, 1
    %2535 = vsyncpa [#allocation4], 1
    %s2536 = scalar_lea.sflag [#allocation4], 1
    %2537 = vsyncpa %s2536, 1

</llo_original>
